<compile_context>
chip_gen: v7x
topology: tpu7x:2x2x1
jax: 0.10.0
libtpu: 0.0.40
codegen_flags: <defaults>
</compile_context>

<pallas_src>
import functools

import jax
import jax.numpy as jnp
from jax.experimental import pallas as pl
from jax.experimental.pallas import tpu as pltpu


def _round_up(x: int, m: int) -> int:
    return ((x + m - 1) // m) * m


# ----------------------------------------------------------------------------
# Kernel
# ----------------------------------------------------------------------------
def _make_attention_kernel(num_head: int, d_pad: int, inv_tp: float):
    """Masked multi-head attention for one query-row block.

    K/V arrive pre-projected (bf16, head-major, lane-padded) with a constant
    index_map (fetched once, VMEM resident).  Heads are processed sequentially
    to bound f32 intermediates at (block_rows, n_a_cols).
    """
    inv_nh = 1.0 / float(num_head)

    def kernel(xq_ref, mask_ref, wq_ref, bq_ref, k_ref, v_ref, out_ref, attn_ref):
        f32 = jnp.float32
        bf16 = jnp.bfloat16

        xq = xq_ref[...]                                       # (blk, n_f_pad) bf16
        # additive mask bias for this row block (shared by all heads); finite
        # -1e9 instead of -inf keeps the softmax NaN-safe on padded rows.
        neg = mask_ref[...].astype(f32) * f32(-1e9)            # (blk, n_a_cols)

        attn_acc = jnp.zeros(attn_ref.shape, f32)
        for h in range(num_head):
            # ---- Q projection for this head; fold 1/tp before the bf16 cast.
            qh = jnp.dot(xq, wq_ref[h], preferred_element_type=f32) + bq_ref[h]
            qh = (qh * inv_tp).astype(bf16)                    # (blk, d_pad)

            # ---- scores: q @ k^T  -> (blk, n_a_cols), f32 accumulate
            s = jax.lax.dot_general(qh, k_ref[h], (((1,), (1,)), ((), ())),
                                    preferred_element_type=f32)
            s = s + neg
            s = s - jnp.max(s, axis=-1, keepdims=True)
            p = jnp.exp(s)
            inv_den = pl.reciprocal(jnp.sum(p, axis=-1, keepdims=True), approx=True)
            alpha = p * inv_den                                # f32 softmax

            # ---- attention-weighted values -> this head's 128-aligned slot
            out_ref[:, h * d_pad:(h + 1) * d_pad] = jnp.dot(
                alpha.astype(bf16), v_ref[h], preferred_element_type=f32)
            attn_acc = attn_acc + alpha

        attn_ref[...] = attn_acc * inv_nh                      # mean over heads

    return kernel


# ----------------------------------------------------------------------------
# Wrapper
# ----------------------------------------------------------------------------
@functools.partial(jax.jit,
                   static_argnames=("num_head", "temperature_coeff", "block_rows"))
def nonlocal_interaction_forward(x, batch_mask, params, *, num_head=4,
                                 temperature_coeff=2.0, block_rows=None):
    """x: (1, n_a, n_f) f32;  batch_mask: (n_a, n_a) bool (True => masked).

    Returns (out (1, n_a, n_f), attn (1, n_a, n_a)) — i.e. return_attn_matrix=True.
    """
    n_a, n_f = x.shape[1], x.shape[2]
    assert num_head > 0 and n_f % num_head == 0
    d = n_f // num_head
    inv_tp = 1.0 / float((temperature_coeff * d) ** 0.5)

    # ---- tile-aligned padded layout (static at trace time) ----------------
    d_pad = _round_up(d, 128)          # per-head feature dim, lane aligned
    n_f_pad = _round_up(n_f, 128)      # input feature dim for the Q matmul
    n_a_cols = _round_up(n_a, 128)     # key / attention-column axis (lane dense)
    if block_rows is None:
        block_rows = min(256, _round_up(n_a, 32))
    block_rows = _round_up(block_rows, 32)   # int8/bf16 sublane-pack safe
    n_a_rows = _round_up(n_a, block_rows)

    x0 = x[0]

    # ---- K/V projections hoisted out of the kernel (done once, not once per
    #      query block); head-major, zero-padded, bf16 MXU operands ---------
    def project_heads(W, b):
        y = x0 @ W + b                                          # (n_a, n_f) f32
        yh = jnp.transpose(y.reshape(n_a, num_head, d), (1, 0, 2))
        return jnp.pad(yh, ((0, 0), (0, n_a_cols - n_a),
                            (0, d_pad - d))).astype(jnp.bfloat16)

    kb = project_heads(params["Wk"], params["bk"])              # (nh, n_a_cols, d_pad)
    vb = project_heads(params["Wv"], params["bv"])

    # ---- Q weights pre-split per head (no sub-128-lane slicing in-kernel) -
    wq_h = jnp.transpose(params["Wq"].reshape(n_f, num_head, d), (1, 0, 2))
    wq = jnp.pad(wq_h, ((0, 0), (0, n_f_pad - n_f),
                        (0, d_pad - d))).astype(jnp.bfloat16)   # (nh, n_f_pad, d_pad)
    bq = jnp.pad(params["bq"].reshape(num_head, 1, d),
                 ((0, 0), (0, 0), (0, d_pad - d))).astype(jnp.float32)

    # ---- activations & mask (int8 row tiles; no n_a^2 f32 bias array) -----
    x_p = jnp.pad(x0, ((0, n_a_rows - n_a),
                       (0, n_f_pad - n_f))).astype(jnp.bfloat16)
    mask_i8 = jnp.ones((n_a_rows, n_a_cols), jnp.int8)          # padded cols masked
    mask_i8 = mask_i8.at[:n_a, :n_a].set(batch_mask.astype(jnp.int8))

    kernel = _make_attention_kernel(num_head=num_head, d_pad=d_pad, inv_tp=inv_tp)

    rows = lambda i: (i, 0)
    const3 = lambda i: (0, 0, 0)
    grid = (n_a_rows // block_rows,)

    out_pad, attn_pad = pl.pallas_call(
        kernel,
        out_shape=(jax.ShapeDtypeStruct((n_a_rows, num_head * d_pad), jnp.float32),
                   jax.ShapeDtypeStruct((n_a_rows, n_a_cols), jnp.float32)),
        grid=grid,
        in_specs=[
            pl.BlockSpec((block_rows, n_f_pad), rows),          # x rows (Q source)
            pl.BlockSpec((block_rows, n_a_cols), rows),         # int8 mask rows
            pl.BlockSpec((num_head, n_f_pad, d_pad), const3),   # Wq per head
            pl.BlockSpec((num_head, 1, d_pad), const3),         # bq per head
            pl.BlockSpec((num_head, n_a_cols, d_pad), const3),  # K (pre-projected)
            pl.BlockSpec((num_head, n_a_cols, d_pad), const3),  # V (pre-projected)
        ],
        out_specs=(pl.BlockSpec((block_rows, num_head * d_pad), rows),
                   pl.BlockSpec((block_rows, n_a_cols), rows)),
        compiler_params=pltpu.CompilerParams(
            dimension_semantics=("parallel",),
            vmem_limit_bytes=48 << 20),
    )(x_p, mask_i8, wq, bq, kb, vb)

    # strip padding: rows, then the per-head feature padding
    out = out_pad[:n_a].reshape(n_a, num_head, d_pad)[:, :, :d].reshape(n_a, n_f)
    attn = attn_pad[:n_a, :n_a]
    return out[None], attn[None]


# ----------------------------------------------------------------------------
# Parameters + pure-JAX reference (mirrors the PyTorch forward)
# ----------------------------------------------------------------------------
def make_params(key, n_f):
    ks = jax.random.split(key, 6)
    lim = 1.0 / (n_f ** 0.5)

    def uni(k, shape):
        return jax.random.uniform(k, shape, jnp.float32, -lim, lim)

    return {"Wq": uni(ks[0], (n_f, n_f)), "bq": uni(ks[1], (n_f,)),
            "Wk": uni(ks[2], (n_f, n_f)), "bk": uni(ks[3], (n_f,)),
            "Wv": uni(ks[4], (n_f, n_f)), "bv": uni(ks[5], (n_f,))}


def nonlocal_interaction_ref(x, batch_mask, params, num_head, temperature_coeff):
    n_a, n_f = x.shape[1], x.shape[2]
    d = n_f // num_head
    tp = (temperature_coeff * d) ** 0.5
    xs = x[0]
    q = xs @ params["Wq"] + params["bq"]
    k = xs @ params["Wk"] + params["bk"]
    v = xs @ params["Wv"] + params["bv"]
    qh = jnp.transpose(q.reshape(n_a, num_head, d), (1, 0, 2))
    kh = jnp.transpose(k.reshape(n_a, num_head, d), (1, 0, 2))
    vh = jnp.transpose(v.reshape(n_a, num_head, d), (1, 0, 2))
    a = jnp.einsum("hid,hjd->hij", qh, kh) / tp
    a = jnp.where(batch_mask[None], -jnp.inf, a)
    alpha = jax.nn.softmax(a, axis=-1)
    out = jnp.transpose(jnp.einsum("hij,hjd->hid", alpha, vh),
                        (1, 0, 2)).reshape(n_a, n_f)
    return out[None], alpha.mean(0)[None]


# ----------------------------------------------------------------------------
# Demo / self-test
# ----------------------------------------------------------------------------
if __name__ == "__main__":
    N_A, N_F, N_H = 20, 32, 4
    TEMP = 2.0

    key = jax.random.PRNGKey(0)
    kx, kp = jax.random.split(key)
    x = jax.random.normal(kx, (1, N_A, N_F), jnp.float32)
    mol = jnp.array([0] * 7 + [1] * 6 + [2] * 7)          # 3 molecules in batch
    batch_mask = mol[:, None] != mol[None, :]             # True -> masked
    params = make_params(kp, N_F)

    out, attn = nonlocal_interaction_forward(
        x, batch_mask, params, num_head=N_H, temperature_coeff=TEMP)
    out, attn = jax.block_until_ready((out, attn))

    ref_out, ref_attn = nonlocal_interaction_ref(x, batch_mask, params, N_H, TEMP)
    err_out = float(jnp.max(jnp.abs(out - ref_out)))
    err_attn = float(jnp.max(jnp.abs(attn - ref_attn)))
    assert err_out < 3e-2, f"output mismatch: max abs err {err_out}"
    assert err_attn < 3e-2, f"attention mismatch: max abs err {err_attn}"

    print("KERNEL_OK")
</pallas_src>

<mosaic_0001>
module attributes {stable_mosaic.version = 11 : i64} {
  func.func @kernel(%arg0: i32, %arg1: memref<32x128xbf16, #tpu.memory_space<vmem>>, %arg2: memref<32x128xi8, #tpu.memory_space<vmem>>, %arg3: memref<4x128x128xbf16, #tpu.memory_space<vmem>>, %arg4: memref<4x1x128xf32, #tpu.memory_space<vmem>>, %arg5: memref<4x128x128xbf16, #tpu.memory_space<vmem>>, %arg6: memref<4x128x128xbf16, #tpu.memory_space<vmem>>, %arg7: memref<32x512xf32, #tpu.memory_space<vmem>>, %arg8: memref<32x128xf32, #tpu.memory_space<vmem>>) attributes {dimension_semantics = [#tpu.dimension_semantics<parallel>], iteration_bounds = array<i64: 1>, scalar_prefetch = 0 : i64, scratch_operands = 0 : i64, tpu.core_type = #tpu.core_type<tc>, window_params = [{transform_indices = @transform_0, window_bounds = array<i64: 32, 128>}, {transform_indices = @transform_1, window_bounds = array<i64: 32, 128>}, {pipeline_mode = #tpu.pipeline_mode<synchronous>, transform_indices = @transform_2, window_bounds = array<i64: 4, 128, 128>}, {pipeline_mode = #tpu.pipeline_mode<synchronous>, transform_indices = @transform_3, window_bounds = array<i64: 4, 1, 128>}, {pipeline_mode = #tpu.pipeline_mode<synchronous>, transform_indices = @transform_4, window_bounds = array<i64: 4, 128, 128>}, {pipeline_mode = #tpu.pipeline_mode<synchronous>, transform_indices = @transform_5, window_bounds = array<i64: 4, 128, 128>}, {transform_indices = @transform_6, window_bounds = array<i64: 32, 512>}, {transform_indices = @transform_7, window_bounds = array<i64: 32, 128>}]} {
    %c0 = arith.constant 0 : index
    %c0_0 = arith.constant 0 : index
    %0 = vector.load %arg1[%c0, %c0_0] : memref<32x128xbf16, #tpu.memory_space<vmem>>, vector<32x128xbf16>
    %c0_1 = arith.constant 0 : index
    %c0_2 = arith.constant 0 : index
    %1 = vector.load %arg2[%c0_1, %c0_2] : memref<32x128xi8, #tpu.memory_space<vmem>>, vector<32x128xi8>
    %2 = arith.sitofp %1 : vector<32x128xi8> to vector<32x128xf32>
    %cst = arith.constant -1.000000e+09 : f32
    %3 = vector.broadcast %cst : f32 to vector<32x128xf32>
    %4 = arith.mulf %2, %3 : vector<32x128xf32>
    %cst_3 = arith.constant 0.000000e+00 : f32
    %5 = vector.broadcast %cst_3 : f32 to vector<32x128xf32>
    %c0_4 = arith.constant 0 : index
    %c0_5 = arith.constant 0 : index
    %c0_6 = arith.constant 0 : index
    %6 = vector.load %arg3[%c0_4, %c0_5, %c0_6] : memref<4x128x128xbf16, #tpu.memory_space<vmem>>, vector<1x128x128xbf16>
    %7 = vector.shape_cast %6 : vector<1x128x128xbf16> to vector<128x128xbf16>
    %cst_7 = arith.constant dense<0.000000e+00> : vector<32x128xf32>
    %8 = tpu.matmul %0, %7, %cst_7 {dimension_numbers = #tpu.dot_dimension_numbers<[1], [0], [0], [1], [0, 0, 1, 1], [], []>} : vector<32x128xbf16>, vector<128x128xbf16>, vector<32x128xf32> -> vector<32x128xf32>
    %c0_8 = arith.constant 0 : index
    %c0_9 = arith.constant 0 : index
    %c0_10 = arith.constant 0 : index
    %9 = vector.load %arg4[%c0_8, %c0_9, %c0_10] : memref<4x1x128xf32, #tpu.memory_space<vmem>>, vector<1x1x128xf32>
    %10 = vector.shape_cast %9 : vector<1x1x128xf32> to vector<1x128xf32>
    %11 = vector.broadcast %10 : vector<1x128xf32> to vector<32x128xf32>
    %12 = arith.addf %8, %11 : vector<32x128xf32>
    %cst_11 = arith.constant 2.500000e-01 : f32
    %13 = vector.broadcast %cst_11 : f32 to vector<32x128xf32>
    %14 = arith.mulf %12, %13 : vector<32x128xf32>
    %15 = arith.truncf %14 : vector<32x128xf32> to vector<32x128xbf16>
    %c0_12 = arith.constant 0 : index
    %c0_13 = arith.constant 0 : index
    %c0_14 = arith.constant 0 : index
    %16 = vector.load %arg5[%c0_12, %c0_13, %c0_14] : memref<4x128x128xbf16, #tpu.memory_space<vmem>>, vector<1x128x128xbf16>
    %17 = vector.shape_cast %16 : vector<1x128x128xbf16> to vector<128x128xbf16>
    %cst_15 = arith.constant dense<0.000000e+00> : vector<32x128xf32>
    %18 = tpu.matmul %15, %17, %cst_15 {dimension_numbers = #tpu.dot_dimension_numbers<[1], [1], [0], [0], [0, 0, 1, 0], [], []>} : vector<32x128xbf16>, vector<128x128xbf16>, vector<32x128xf32> -> vector<32x128xf32>
    %19 = arith.addf %18, %4 : vector<32x128xf32>
    %cst_16 = arith.constant dense<0xFF800000> : vector<32xf32>
    %20 = vector.multi_reduction <maximumf>, %19, %cst_16 [1] : vector<32x128xf32> to vector<32xf32>
    %21 = vector.shape_cast %20 : vector<32xf32> to vector<32x1xf32>
    %22 = vector.broadcast %21 : vector<32x1xf32> to vector<32x128xf32>
    %23 = arith.subf %19, %22 : vector<32x128xf32>
    %24 = math.exp %23 : vector<32x128xf32>
    %cst_17 = arith.constant dense<0.000000e+00> : vector<32xf32>
    %25 = vector.multi_reduction <add>, %24, %cst_17 [1] : vector<32x128xf32> to vector<32xf32>
    %26 = vector.shape_cast %25 : vector<32xf32> to vector<32x1xf32>
    %27 = tpu.reciprocal %26 {approx = true} : vector<32x1xf32> -> vector<32x1xf32>
    %28 = vector.broadcast %27 : vector<32x1xf32> to vector<32x128xf32>
    %29 = arith.mulf %24, %28 : vector<32x128xf32>
    %30 = arith.truncf %29 : vector<32x128xf32> to vector<32x128xbf16>
    %c0_18 = arith.constant 0 : index
    %c0_19 = arith.constant 0 : index
    %c0_20 = arith.constant 0 : index
    %31 = vector.load %arg6[%c0_18, %c0_19, %c0_20] : memref<4x128x128xbf16, #tpu.memory_space<vmem>>, vector<1x128x128xbf16>
    %32 = vector.shape_cast %31 : vector<1x128x128xbf16> to vector<128x128xbf16>
    %cst_21 = arith.constant dense<0.000000e+00> : vector<32x128xf32>
    %33 = tpu.matmul %30, %32, %cst_21 {dimension_numbers = #tpu.dot_dimension_numbers<[1], [0], [0], [1], [0, 0, 1, 1], [], []>} : vector<32x128xbf16>, vector<128x128xbf16>, vector<32x128xf32> -> vector<32x128xf32>
    %c0_22 = arith.constant 0 : index
    %c0_23 = arith.constant 0 : index
    %34 = vector.load %arg7[%c0_22, %c0_23] : memref<32x512xf32, #tpu.memory_space<vmem>>, vector<32x128xf32>
    tpu.vector_store %arg7[%c0_22, %c0_23], %33 {strides = array<i32>} : memref<32x512xf32, #tpu.memory_space<vmem>>, vector<32x128xf32>,
    %35 = arith.addf %5, %29 : vector<32x128xf32>
    %c1 = arith.constant 1 : index
    %c0_24 = arith.constant 0 : index
    %c0_25 = arith.constant 0 : index
    %36 = vector.load %arg3[%c1, %c0_24, %c0_25] : memref<4x128x128xbf16, #tpu.memory_space<vmem>>, vector<1x128x128xbf16>
    %37 = vector.shape_cast %36 : vector<1x128x128xbf16> to vector<128x128xbf16>
    %cst_26 = arith.constant dense<0.000000e+00> : vector<32x128xf32>
    %38 = tpu.matmul %0, %37, %cst_26 {dimension_numbers = #tpu.dot_dimension_numbers<[1], [0], [0], [1], [0, 0, 1, 1], [], []>} : vector<32x128xbf16>, vector<128x128xbf16>, vector<32x128xf32> -> vector<32x128xf32>
    %c1_27 = arith.constant 1 : index
    %c0_28 = arith.constant 0 : index
    %c0_29 = arith.constant 0 : index
    %39 = vector.load %arg4[%c1_27, %c0_28, %c0_29] : memref<4x1x128xf32, #tpu.memory_space<vmem>>, vector<1x1x128xf32>
    %40 = vector.shape_cast %39 : vector<1x1x128xf32> to vector<1x128xf32>
    %41 = vector.broadcast %40 : vector<1x128xf32> to vector<32x128xf32>
    %42 = arith.addf %38, %41 : vector<32x128xf32>
    %cst_30 = arith.constant 2.500000e-01 : f32
    %43 = vector.broadcast %cst_30 : f32 to vector<32x128xf32>
    %44 = arith.mulf %42, %43 : vector<32x128xf32>
    %45 = arith.truncf %44 : vector<32x128xf32> to vector<32x128xbf16>
    %c1_31 = arith.constant 1 : index
    %c0_32 = arith.constant 0 : index
    %c0_33 = arith.constant 0 : index
    %46 = vector.load %arg5[%c1_31, %c0_32, %c0_33] : memref<4x128x128xbf16, #tpu.memory_space<vmem>>, vector<1x128x128xbf16>
    %47 = vector.shape_cast %46 : vector<1x128x128xbf16> to vector<128x128xbf16>
    %cst_34 = arith.constant dense<0.000000e+00> : vector<32x128xf32>
    %48 = tpu.matmul %45, %47, %cst_34 {dimension_numbers = #tpu.dot_dimension_numbers<[1], [1], [0], [0], [0, 0, 1, 0], [], []>} : vector<32x128xbf16>, vector<128x128xbf16>, vector<32x128xf32> -> vector<32x128xf32>
    %49 = arith.addf %48, %4 : vector<32x128xf32>
    %cst_35 = arith.constant dense<0xFF800000> : vector<32xf32>
    %50 = vector.multi_reduction <maximumf>, %49, %cst_35 [1] : vector<32x128xf32> to vector<32xf32>
    %51 = vector.shape_cast %50 : vector<32xf32> to vector<32x1xf32>
    %52 = vector.broadcast %51 : vector<32x1xf32> to vector<32x128xf32>
    %53 = arith.subf %49, %52 : vector<32x128xf32>
    %54 = math.exp %53 : vector<32x128xf32>
    %cst_36 = arith.constant dense<0.000000e+00> : vector<32xf32>
    %55 = vector.multi_reduction <add>, %54, %cst_36 [1] : vector<32x128xf32> to vector<32xf32>
    %56 = vector.shape_cast %55 : vector<32xf32> to vector<32x1xf32>
    %57 = tpu.reciprocal %56 {approx = true} : vector<32x1xf32> -> vector<32x1xf32>
    %58 = vector.broadcast %57 : vector<32x1xf32> to vector<32x128xf32>
    %59 = arith.mulf %54, %58 : vector<32x128xf32>
    %60 = arith.truncf %59 : vector<32x128xf32> to vector<32x128xbf16>
    %c1_37 = arith.constant 1 : index
    %c0_38 = arith.constant 0 : index
    %c0_39 = arith.constant 0 : index
    %61 = vector.load %arg6[%c1_37, %c0_38, %c0_39] : memref<4x128x128xbf16, #tpu.memory_space<vmem>>, vector<1x128x128xbf16>
    %62 = vector.shape_cast %61 : vector<1x128x128xbf16> to vector<128x128xbf16>
    %cst_40 = arith.constant dense<0.000000e+00> : vector<32x128xf32>
    %63 = tpu.matmul %60, %62, %cst_40 {dimension_numbers = #tpu.dot_dimension_numbers<[1], [0], [0], [1], [0, 0, 1, 1], [], []>} : vector<32x128xbf16>, vector<128x128xbf16>, vector<32x128xf32> -> vector<32x128xf32>
    %c0_41 = arith.constant 0 : index
    %c128 = arith.constant 128 : index
    %64 = vector.load %arg7[%c0_41, %c128] : memref<32x512xf32, #tpu.memory_space<vmem>>, vector<32x128xf32>
    tpu.vector_store %arg7[%c0_41, %c128], %63 {strides = array<i32>} : memref<32x512xf32, #tpu.memory_space<vmem>>, vector<32x128xf32>,
    %65 = arith.addf %35, %59 : vector<32x128xf32>
    %c2 = arith.constant 2 : index
    %c0_42 = arith.constant 0 : index
    %c0_43 = arith.constant 0 : index
    %66 = vector.load %arg3[%c2, %c0_42, %c0_43] : memref<4x128x128xbf16, #tpu.memory_space<vmem>>, vector<1x128x128xbf16>
    %67 = vector.shape_cast %66 : vector<1x128x128xbf16> to vector<128x128xbf16>
    %cst_44 = arith.constant dense<0.000000e+00> : vector<32x128xf32>
    %68 = tpu.matmul %0, %67, %cst_44 {dimension_numbers = #tpu.dot_dimension_numbers<[1], [0], [0], [1], [0, 0, 1, 1], [], []>} : vector<32x128xbf16>, vector<128x128xbf16>, vector<32x128xf32> -> vector<32x128xf32>
    %c2_45 = arith.constant 2 : index
    %c0_46 = arith.constant 0 : index
    %c0_47 = arith.constant 0 : index
    %69 = vector.load %arg4[%c2_45, %c0_46, %c0_47] : memref<4x1x128xf32, #tpu.memory_space<vmem>>, vector<1x1x128xf32>
    %70 = vector.shape_cast %69 : vector<1x1x128xf32> to vector<1x128xf32>
    %71 = vector.broadcast %70 : vector<1x128xf32> to vector<32x128xf32>
    %72 = arith.addf %68, %71 : vector<32x128xf32>
    %cst_48 = arith.constant 2.500000e-01 : f32
    %73 = vector.broadcast %cst_48 : f32 to vector<32x128xf32>
    %74 = arith.mulf %72, %73 : vector<32x128xf32>
    %75 = arith.truncf %74 : vector<32x128xf32> to vector<32x128xbf16>
    %c2_49 = arith.constant 2 : index
    %c0_50 = arith.constant 0 : index
    %c0_51 = arith.constant 0 : index
    %76 = vector.load %arg5[%c2_49, %c0_50, %c0_51] : memref<4x128x128xbf16, #tpu.memory_space<vmem>>, vector<1x128x128xbf16>
    %77 = vector.shape_cast %76 : vector<1x128x128xbf16> to vector<128x128xbf16>
    %cst_52 = arith.constant dense<0.000000e+00> : vector<32x128xf32>
    %78 = tpu.matmul %75, %77, %cst_52 {dimension_numbers = #tpu.dot_dimension_numbers<[1], [1], [0], [0], [0, 0, 1, 0], [], []>} : vector<32x128xbf16>, vector<128x128xbf16>, vector<32x128xf32> -> vector<32x128xf32>
    %79 = arith.addf %78, %4 : vector<32x128xf32>
    %cst_53 = arith.constant dense<0xFF800000> : vector<32xf32>
    %80 = vector.multi_reduction <maximumf>, %79, %cst_53 [1] : vector<32x128xf32> to vector<32xf32>
    %81 = vector.shape_cast %80 : vector<32xf32> to vector<32x1xf32>
    %82 = vector.broadcast %81 : vector<32x1xf32> to vector<32x128xf32>
    %83 = arith.subf %79, %82 : vector<32x128xf32>
    %84 = math.exp %83 : vector<32x128xf32>
    %cst_54 = arith.constant dense<0.000000e+00> : vector<32xf32>
    %85 = vector.multi_reduction <add>, %84, %cst_54 [1] : vector<32x128xf32> to vector<32xf32>
    %86 = vector.shape_cast %85 : vector<32xf32> to vector<32x1xf32>
    %87 = tpu.reciprocal %86 {approx = true} : vector<32x1xf32> -> vector<32x1xf32>
    %88 = vector.broadcast %87 : vector<32x1xf32> to vector<32x128xf32>
    %89 = arith.mulf %84, %88 : vector<32x128xf32>
    %90 = arith.truncf %89 : vector<32x128xf32> to vector<32x128xbf16>
    %c2_55 = arith.constant 2 : index
    %c0_56 = arith.constant 0 : index
    %c0_57 = arith.constant 0 : index
    %91 = vector.load %arg6[%c2_55, %c0_56, %c0_57] : memref<4x128x128xbf16, #tpu.memory_space<vmem>>, vector<1x128x128xbf16>
    %92 = vector.shape_cast %91 : vector<1x128x128xbf16> to vector<128x128xbf16>
    %cst_58 = arith.constant dense<0.000000e+00> : vector<32x128xf32>
    %93 = tpu.matmul %90, %92, %cst_58 {dimension_numbers = #tpu.dot_dimension_numbers<[1], [0], [0], [1], [0, 0, 1, 1], [], []>} : vector<32x128xbf16>, vector<128x128xbf16>, vector<32x128xf32> -> vector<32x128xf32>
    %c0_59 = arith.constant 0 : index
    %c256 = arith.constant 256 : index
    %94 = vector.load %arg7[%c0_59, %c256] : memref<32x512xf32, #tpu.memory_space<vmem>>, vector<32x128xf32>
    tpu.vector_store %arg7[%c0_59, %c256], %93 {strides = array<i32>} : memref<32x512xf32, #tpu.memory_space<vmem>>, vector<32x128xf32>,
    %95 = arith.addf %65, %89 : vector<32x128xf32>
    %c3 = arith.constant 3 : index
    %c0_60 = arith.constant 0 : index
    %c0_61 = arith.constant 0 : index
    %96 = vector.load %arg3[%c3, %c0_60, %c0_61] : memref<4x128x128xbf16, #tpu.memory_space<vmem>>, vector<1x128x128xbf16>
    %97 = vector.shape_cast %96 : vector<1x128x128xbf16> to vector<128x128xbf16>
    %cst_62 = arith.constant dense<0.000000e+00> : vector<32x128xf32>
    %98 = tpu.matmul %0, %97, %cst_62 {dimension_numbers = #tpu.dot_dimension_numbers<[1], [0], [0], [1], [0, 0, 1, 1], [], []>} : vector<32x128xbf16>, vector<128x128xbf16>, vector<32x128xf32> -> vector<32x128xf32>
    %c3_63 = arith.constant 3 : index
    %c0_64 = arith.constant 0 : index
    %c0_65 = arith.constant 0 : index
    %99 = vector.load %arg4[%c3_63, %c0_64, %c0_65] : memref<4x1x128xf32, #tpu.memory_space<vmem>>, vector<1x1x128xf32>
    %100 = vector.shape_cast %99 : vector<1x1x128xf32> to vector<1x128xf32>
    %101 = vector.broadcast %100 : vector<1x128xf32> to vector<32x128xf32>
    %102 = arith.addf %98, %101 : vector<32x128xf32>
    %cst_66 = arith.constant 2.500000e-01 : f32
    %103 = vector.broadcast %cst_66 : f32 to vector<32x128xf32>
    %104 = arith.mulf %102, %103 : vector<32x128xf32>
    %105 = arith.truncf %104 : vector<32x128xf32> to vector<32x128xbf16>
    %c3_67 = arith.constant 3 : index
    %c0_68 = arith.constant 0 : index
    %c0_69 = arith.constant 0 : index
    %106 = vector.load %arg5[%c3_67, %c0_68, %c0_69] : memref<4x128x128xbf16, #tpu.memory_space<vmem>>, vector<1x128x128xbf16>
    %107 = vector.shape_cast %106 : vector<1x128x128xbf16> to vector<128x128xbf16>
    %cst_70 = arith.constant dense<0.000000e+00> : vector<32x128xf32>
    %108 = tpu.matmul %105, %107, %cst_70 {dimension_numbers = #tpu.dot_dimension_numbers<[1], [1], [0], [0], [0, 0, 1, 0], [], []>} : vector<32x128xbf16>, vector<128x128xbf16>, vector<32x128xf32> -> vector<32x128xf32>
    %109 = arith.addf %108, %4 : vector<32x128xf32>
    %cst_71 = arith.constant dense<0xFF800000> : vector<32xf32>
    %110 = vector.multi_reduction <maximumf>, %109, %cst_71 [1] : vector<32x128xf32> to vector<32xf32>
    %111 = vector.shape_cast %110 : vector<32xf32> to vector<32x1xf32>
    %112 = vector.broadcast %111 : vector<32x1xf32> to vector<32x128xf32>
    %113 = arith.subf %109, %112 : vector<32x128xf32>
    %114 = math.exp %113 : vector<32x128xf32>
    %cst_72 = arith.constant dense<0.000000e+00> : vector<32xf32>
    %115 = vector.multi_reduction <add>, %114, %cst_72 [1] : vector<32x128xf32> to vector<32xf32>
    %116 = vector.shape_cast %115 : vector<32xf32> to vector<32x1xf32>
    %117 = tpu.reciprocal %116 {approx = true} : vector<32x1xf32> -> vector<32x1xf32>
    %118 = vector.broadcast %117 : vector<32x1xf32> to vector<32x128xf32>
    %119 = arith.mulf %114, %118 : vector<32x128xf32>
    %120 = arith.truncf %119 : vector<32x128xf32> to vector<32x128xbf16>
    %c3_73 = arith.constant 3 : index
    %c0_74 = arith.constant 0 : index
    %c0_75 = arith.constant 0 : index
    %121 = vector.load %arg6[%c3_73, %c0_74, %c0_75] : memref<4x128x128xbf16, #tpu.memory_space<vmem>>, vector<1x128x128xbf16>
    %122 = vector.shape_cast %121 : vector<1x128x128xbf16> to vector<128x128xbf16>
    %cst_76 = arith.constant dense<0.000000e+00> : vector<32x128xf32>
    %123 = tpu.matmul %120, %122, %cst_76 {dimension_numbers = #tpu.dot_dimension_numbers<[1], [0], [0], [1], [0, 0, 1, 1], [], []>} : vector<32x128xbf16>, vector<128x128xbf16>, vector<32x128xf32> -> vector<32x128xf32>
    %c0_77 = arith.constant 0 : index
    %c384 = arith.constant 384 : index
    %124 = vector.load %arg7[%c0_77, %c384] : memref<32x512xf32, #tpu.memory_space<vmem>>, vector<32x128xf32>
    tpu.vector_store %arg7[%c0_77, %c384], %123 {strides = array<i32>} : memref<32x512xf32, #tpu.memory_space<vmem>>, vector<32x128xf32>,
    %125 = arith.addf %95, %119 : vector<32x128xf32>
    %cst_78 = arith.constant 2.500000e-01 : f32
    %126 = vector.broadcast %cst_78 : f32 to vector<32x128xf32>
    %127 = arith.mulf %125, %126 : vector<32x128xf32>
    %c0_79 = arith.constant 0 : index
    %c0_80 = arith.constant 0 : index
    %128 = vector.load %arg8[%c0_79, %c0_80] : memref<32x128xf32, #tpu.memory_space<vmem>>, vector<32x128xf32>
    tpu.vector_store %arg8[%c0_79, %c0_80], %127 {strides = array<i32>} : memref<32x128xf32, #tpu.memory_space<vmem>>, vector<32x128xf32>,
    return
  }
  func.func @transform_0(%arg0: i32) -> (i32, i32) {
    %c0_i32 = arith.constant 0 : i32
    %c0_i32_0 = arith.constant 0 : i32
    return %arg0, %c0_i32 : i32, i32
  }
  func.func @transform_1(%arg0: i32) -> (i32, i32) {
    %c0_i32 = arith.constant 0 : i32
    %c0_i32_0 = arith.constant 0 : i32
    return %arg0, %c0_i32 : i32, i32
  }
  func.func @transform_2(%arg0: i32) -> (i32, i32, i32) {
    %c0_i32 = arith.constant 0 : i32
    %c0_i32_0 = arith.constant 0 : i32
    %c0_i32_1 = arith.constant 0 : i32
    %c0_i32_2 = arith.constant 0 : i32
    return %c0_i32, %c0_i32_0, %c0_i32_1 : i32, i32, i32
  }
  func.func @transform_3(%arg0: i32) -> (i32, i32, i32) {
    %c0_i32 = arith.constant 0 : i32
    %c0_i32_0 = arith.constant 0 : i32
    %c0_i32_1 = arith.constant 0 : i32
    %c0_i32_2 = arith.constant 0 : i32
    return %c0_i32, %c0_i32_0, %c0_i32_1 : i32, i32, i32
  }
  func.func @transform_4(%arg0: i32) -> (i32, i32, i32) {
    %c0_i32 = arith.constant 0 : i32
    %c0_i32_0 = arith.constant 0 : i32
    %c0_i32_1 = arith.constant 0 : i32
    %c0_i32_2 = arith.constant 0 : i32
    return %c0_i32, %c0_i32_0, %c0_i32_1 : i32, i32, i32
  }
  func.func @transform_5(%arg0: i32) -> (i32, i32, i32) {
    %c0_i32 = arith.constant 0 : i32
    %c0_i32_0 = arith.constant 0 : i32
    %c0_i32_1 = arith.constant 0 : i32
    %c0_i32_2 = arith.constant 0 : i32
    return %c0_i32, %c0_i32_0, %c0_i32_1 : i32, i32, i32
  }
  func.func @transform_6(%arg0: i32) -> (i32, i32) {
    %c0_i32 = arith.constant 0 : i32
    %c0_i32_0 = arith.constant 0 : i32
    return %arg0, %c0_i32 : i32, i32
  }
  func.func @transform_7(%arg0: i32) -> (i32, i32) {
    %c0_i32 = arith.constant 0 : i32
    %c0_i32_0 = arith.constant 0 : i32
    return %arg0, %c0_i32 : i32, i32
  }
}

</mosaic_0001>

<llo_original>
// kernel: nonlocal_interaction_forward.1
$region0: #{nonlocal_interaction_forward.1}
  #allocation0 [shape = 'u32[]', space=smem, size = 0x4, offset = 0x4, fixed_abs, tag = 'smem constant byte address 0x4 - core index']
  #allocation1 [shape = 'u32[144,128]{1,0:T(1,128)}', space=vmem, size = 0x12000, scoped, tag = 'internal scratch']
  %s0 = inlined_call_operand.vmem [shape: bf16[32,128], index: 0, kind: input, shape index: {}]
  %s1 = inlined_call_operand.vmem [shape: s8[32,128], index: 1, kind: input, shape index: {}]
  %s2 = inlined_call_operand.vmem [shape: bf16[4,128,128], index: 2, kind: input, shape index: {}]
  %s3 = inlined_call_operand.vmem [shape: f32[4,1,128], index: 3, kind: input, shape index: {}]
  %s4 = inlined_call_operand.vmem [shape: bf16[4,128,128], index: 4, kind: input, shape index: {}]
  %s5 = inlined_call_operand.vmem [shape: bf16[4,128,128], index: 5, kind: input, shape index: {}]
  %s6 = inlined_call_operand.vmem [shape: f32[32,512], index: 6, kind: output, shape index: {0}]
  %s7 = inlined_call_operand.vmem [shape: f32[32,128], index: 7, kind: output, shape index: {1}]
  %8 = xla_tuple %s6, %s7
  %s9 = sld [smem:[#allocation0]]
  $region42: #{nonlocal_interaction_forward.1} parent=0
    _
  %s11 = ssub.s32 1, %s9
  %s12 = scalar_select 0, %s11, %s9
  // Predicated region
  $region2: #{nonlocal_interaction_forward.1} parent=0 // pred_check
    _
  $region3: #{nonlocal_interaction_forward.1} parent=0 // pred_check_branch
    %14 = sbr.rel (0) target = $region5
  $region4: #{nonlocal_interaction_forward.1} parent=0 // pred_region
    _
  $region5: #{nonlocal_interaction_forward.1} parent=0 // pred_fallthru
    _
  // Predicated region
  $region6: #{nonlocal_interaction_forward.1} parent=0 // pred_check
    _
  $region7: #{nonlocal_interaction_forward.1} parent=0 // pred_check_branch
    %16 = sbr.rel (0) target = $region9
  $region8: #{nonlocal_interaction_forward.1} parent=0 // pred_region
    _
  $region9: #{nonlocal_interaction_forward.1} parent=0 // pred_fallthru
    _
  // Predicated region
  $region10: #{nonlocal_interaction_forward.1} parent=0 // pred_check
    _
  $region11: #{nonlocal_interaction_forward.1} parent=0 // pred_check_branch
    %18 = sbr.rel (0) target = $region13
  $region12: #{nonlocal_interaction_forward.1} parent=0 // pred_region
    _
  $region13: #{nonlocal_interaction_forward.1} parent=0 // pred_fallthru
    _
  // Predicated region
  $region14: #{nonlocal_interaction_forward.1} parent=0 // pred_check
    _
  $region15: #{nonlocal_interaction_forward.1} parent=0 // pred_check_branch
    %20 = sbr.rel (0) target = $region17
  $region16: #{nonlocal_interaction_forward.1} parent=0 // pred_region
    _
  $region17: #{nonlocal_interaction_forward.1} parent=0 // pred_fallthru
    _
  // Predicated region
  $region18: #{nonlocal_interaction_forward.1} parent=0 // pred_check
    _
  $region19: #{nonlocal_interaction_forward.1} parent=0 // pred_check_branch
    %22 = sbr.rel (0) target = $region21
  $region20: #{nonlocal_interaction_forward.1} parent=0 // pred_region
    _
  $region21: #{nonlocal_interaction_forward.1} parent=0 // pred_fallthru
    _
  // Predicated region
  $region22: #{nonlocal_interaction_forward.1} parent=0 // pred_check
    _
  $region23: #{nonlocal_interaction_forward.1} parent=0 // pred_check_branch
    %24 = sbr.rel (0) target = $region25
  $region24: #{nonlocal_interaction_forward.1} parent=0 // pred_region
    _
  $region25: #{nonlocal_interaction_forward.1} parent=0 // pred_fallthru
    _
  %v26 = vld [vmem:[%s0] sm:$0xf]
  %v27 = vld [vmem:[%s0 + $0x4] sm:$0xf]
  %v28 = vld [vmem:[%s0 + $0x8] sm:$0xf]
  %v29 = vld [vmem:[%s0 + $0xc] sm:$0xf]
  %v30 = vld [vmem:[%s1] sm:$0xff]
  %v31 = vunpack.c.0.s8 %v30
  %v32 = vunpack.c.1.s8 %v30
  %v33 = vunpack.c.2.s8 %v30
  %v34 = vunpack.c.3.s8 %v30
  %v35 = vcvt.s32.f32 %v31
  %v36 = vcvt.s32.f32 %v32
  %v37 = vcvt.s32.f32 %v33
  %v38 = vcvt.s32.f32 %v34
  %v39 = vmul.f32 %v35, -1e+09
  %v40 = vmul.f32 %v36, -1e+09
  %v41 = vmul.f32 %v37, -1e+09
  %v42 = vmul.f32 %v38, -1e+09
  %v43 = vld [vmem:[%s2] sm:$0xf]
  %v44 = vld [vmem:[%s2 + $0x4] sm:$0xf]
  %v45 = vld [vmem:[%s2 + $0x8] sm:$0xf]
  %v46 = vld [vmem:[%s2 + $0xc] sm:$0xf]
  %v47 = vld [vmem:[%s2 + $0x10] sm:$0xf]
  %v48 = vld [vmem:[%s2 + $0x14] sm:$0xf]
  %v49 = vld [vmem:[%s2 + $0x18] sm:$0xf]
  %v50 = vld [vmem:[%s2 + $0x1c] sm:$0xf]
  %v51 = vld [vmem:[%s2 + $0x20] sm:$0xf]
  %v52 = vld [vmem:[%s2 + $0x24] sm:$0xf]
  %v53 = vld [vmem:[%s2 + $0x28] sm:$0xf]
  %v54 = vld [vmem:[%s2 + $0x2c] sm:$0xf]
  %v55 = vld [vmem:[%s2 + $0x30] sm:$0xf]
  %v56 = vld [vmem:[%s2 + $0x34] sm:$0xf]
  %v57 = vld [vmem:[%s2 + $0x38] sm:$0xf]
  %v58 = vld [vmem:[%s2 + $0x3c] sm:$0xf]
  %v59 = vld [vmem:[%s3] sm:$0x1]
  %v61 = vlaneseq
  %v62 = vshrl.u32 %v61, 7
  %v63 = vsub.s32 0, %v62
  %v64 = vrot.slane %v59, %v63
  %v70 = vunpack.c.l.b16 %v26
  %v71 = vunpack.c.l.b16 %v27
  %v72 = vunpack.c.l.b16 %v28
  %v73 = vunpack.c.l.b16 %v29
  %v74 = vpack.c.b16 %v71, %v70
  %v75 = vpack.c.b16 %v73, %v72
  %v94 = vunpack.c.l.b16 %v43
  %v95 = vunpack.c.l.b16 %v44
  %v96 = vunpack.c.l.b16 %v45
  %v97 = vunpack.c.l.b16 %v46
  %v98 = vunpack.c.l.b16 %v47
  %v99 = vunpack.c.l.b16 %v48
  %v100 = vunpack.c.l.b16 %v49
  %v101 = vunpack.c.l.b16 %v50
  %v102 = vunpack.c.l.b16 %v51
  %v103 = vunpack.c.l.b16 %v52
  %v104 = vunpack.c.l.b16 %v53
  %v105 = vunpack.c.l.b16 %v54
  %v106 = vunpack.c.l.b16 %v55
  %v107 = vunpack.c.l.b16 %v56
  %v108 = vunpack.c.l.b16 %v57
  %v109 = vunpack.c.l.b16 %v58
  %v110 = vpack.c.b16 %v95, %v94
  %v111 = vpack.c.b16 %v97, %v96
  %v112 = vpack.c.b16 %v99, %v98
  %v113 = vpack.c.b16 %v101, %v100
  %v114 = vpack.c.b16 %v103, %v102
  %v115 = vpack.c.b16 %v105, %v104
  %v116 = vpack.c.b16 %v107, %v106
  %v117 = vpack.c.b16 %v109, %v108
  %126 = vmatprep.subr.bf16.mxu0 0
  %127 = vmatpush1.bf16.msra.mxu0 %v110
  %128 = vmatprep.subr.bf16.mxu0 0
  %129 = vmatpush1.bf16.msra.mxu0 %v111
  %130 = vmatprep.subr.bf16.mxu0 0
  %131 = vmatpush1.bf16.msra.mxu0 %v112
  %132 = vmatprep.subr.bf16.mxu0 0
  %133 = vmatpush1.bf16.msra.mxu0 %v113
  %134 = vmatprep.subr.bf16.mxu0 0
  %135 = vmatpush1.bf16.msra.mxu0 %v114
  %136 = vmatprep.subr.bf16.mxu0 0
  %137 = vmatpush1.bf16.msra.mxu0 %v115
  %138 = vmatprep.subr.bf16.mxu0 0
  %139 = vmatpush1.bf16.msra.mxu0 %v116
  %140 = vmatprep.subr.bf16.mxu0 0
  %141 = vmatpush1.bf16.msra.mxu0 %v117
  %142 = vmatprep.subr.bf16.mxu0 0
  %143 = vmatpush1.bf16.msra.mxu0 0
  %144 = vmatprep.subr.bf16.mxu0 0
  %145 = vmatpush1.bf16.msra.mxu0 0
  %146 = vmatprep.subr.bf16.mxu0 0
  %147 = vmatpush1.bf16.msra.mxu0 0
  %148 = vmatprep.subr.bf16.mxu0 0
  %149 = vmatpush1.bf16.msra.mxu0 0
  %150 = vmatprep.subr.bf16.mxu0 0
  %151 = vmatpush1.bf16.msra.mxu0 0
  %152 = vmatprep.subr.bf16.mxu0 0
  %153 = vmatpush1.bf16.msra.mxu0 0
  %154 = vmatprep.subr.bf16.mxu0 0
  %155 = vmatpush1.bf16.msra.mxu0 0
  %156 = vmatprep.subr.bf16.mxu0 0
  %157 = vmatpush1.bf16.msra.mxu0 0
  %158 = vmatprep.mubr.bf16.mxu0 0
  %159 = vmatmul.mubr.bf16.gmra.mrb[0].mxu0 %v74
  %v160 = vpop.f32.mrb[0].mxu0
  %v161 = vadd.f32 %v64, %v160
  %v162 = vpop.f32.mrb[0].mxu0
  %v163 = vpop.f32.mrb[0].mxu0
  %v164 = vadd.f32 %v64, %v163
  %v165 = vpop.f32.mrb[0].mxu0
  %166 = vmatprep.mubr.bf16.mxu0 0
  %167 = vmatmul.mubr.bf16.gmra.mrb[0].mxu0 %v75
  %v168 = vpop.f32.mrb[0].mxu0
  %v169 = vadd.f32 %v64, %v168
  %v170 = vpop.f32.mrb[0].mxu0
  %v171 = vpop.f32.mrb[0].mxu0
  %v172 = vadd.f32 %v64, %v171
  %v173 = vpop.f32.mrb[0].mxu0
  %174 = vdwg.mxu0
  %v175 = vmul.f32 %v161, 0.25
  %v176 = vmul.f32 %v164, 0.25
  %v177 = vmul.f32 %v169, 0.25
  %v178 = vmul.f32 %v172, 0.25
  %v179 = vpack.c.bf16 %v176, %v175
  %v180 = vpack.c.bf16 %v178, %v177
  %v181 = vld [vmem:[%s4] sm:$0xf]
  %v182 = vld [vmem:[%s4 + $0x4] sm:$0xf]
  %v183 = vld [vmem:[%s4 + $0x8] sm:$0xf]
  %v184 = vld [vmem:[%s4 + $0xc] sm:$0xf]
  %v185 = vld [vmem:[%s4 + $0x10] sm:$0xf]
  %v186 = vld [vmem:[%s4 + $0x14] sm:$0xf]
  %v187 = vld [vmem:[%s4 + $0x18] sm:$0xf]
  %v188 = vld [vmem:[%s4 + $0x1c] sm:$0xf]
  %v189 = vld [vmem:[%s4 + $0x20] sm:$0xf]
  %v190 = vld [vmem:[%s4 + $0x24] sm:$0xf]
  %v191 = vld [vmem:[%s4 + $0x28] sm:$0xf]
  %v192 = vld [vmem:[%s4 + $0x2c] sm:$0xf]
  %v193 = vld [vmem:[%s4 + $0x30] sm:$0xf]
  %v194 = vld [vmem:[%s4 + $0x34] sm:$0xf]
  %v195 = vld [vmem:[%s4 + $0x38] sm:$0xf]
  %v196 = vld [vmem:[%s4 + $0x3c] sm:$0xf]
  %v213 = vunpack.c.l.b16 %v181
  %v214 = vunpack.c.l.b16 %v182
  %v215 = vunpack.c.l.b16 %v183
  %v216 = vunpack.c.l.b16 %v184
  %v217 = vunpack.c.l.b16 %v185
  %v218 = vunpack.c.l.b16 %v186
  %v219 = vunpack.c.l.b16 %v187
  %v220 = vunpack.c.l.b16 %v188
  %v221 = vunpack.c.l.b16 %v189
  %v222 = vunpack.c.l.b16 %v190
  %v223 = vunpack.c.l.b16 %v191
  %v224 = vunpack.c.l.b16 %v192
  %v225 = vunpack.c.l.b16 %v193
  %v226 = vunpack.c.l.b16 %v194
  %v227 = vunpack.c.l.b16 %v195
  %v228 = vunpack.c.l.b16 %v196
  %v229 = vpack.c.b16 %v214, %v213
  %v230 = vpack.c.b16 %v216, %v215
  %v231 = vpack.c.b16 %v218, %v217
  %v232 = vpack.c.b16 %v220, %v219
  %v233 = vpack.c.b16 %v222, %v221
  %v234 = vpack.c.b16 %v224, %v223
  %v235 = vpack.c.b16 %v226, %v225
  %v236 = vpack.c.b16 %v228, %v227
  %245 = vmatprep.subr.bf16.mxu0 0
  %246 = vmatpush1.bf16.xpose.msra.mxu0 %v229
  %247 = vmatprep.subr.bf16.mxu0 0
  %248 = vmatpush1.bf16.xpose.msra.mxu0 %v230
  %249 = vmatprep.subr.bf16.mxu0 0
  %250 = vmatpush1.bf16.xpose.msra.mxu0 %v231
  %251 = vmatprep.subr.bf16.mxu0 0
  %252 = vmatpush1.bf16.xpose.msra.mxu0 %v232
  %253 = vmatprep.subr.bf16.mxu0 0
  %254 = vmatpush1.bf16.xpose.msra.mxu0 %v233
  %255 = vmatprep.subr.bf16.mxu0 0
  %256 = vmatpush1.bf16.xpose.msra.mxu0 %v234
  %257 = vmatprep.subr.bf16.mxu0 0
  %258 = vmatpush1.bf16.xpose.msra.mxu0 %v235
  %259 = vmatprep.subr.bf16.mxu0 0
  %260 = vmatpush1.bf16.xpose.msra.mxu0 %v236
  %261 = vmatprep.subr.bf16.mxu0 0
  %262 = vmatpush1.bf16.xpose.msra.mxu0 0
  %263 = vmatprep.subr.bf16.mxu0 0
  %264 = vmatpush1.bf16.xpose.msra.mxu0 0
  %265 = vmatprep.subr.bf16.mxu0 0
  %266 = vmatpush1.bf16.xpose.msra.mxu0 0
  %267 = vmatprep.subr.bf16.mxu0 0
  %268 = vmatpush1.bf16.xpose.msra.mxu0 0
  %269 = vmatprep.subr.bf16.mxu0 0
  %270 = vmatpush1.bf16.xpose.msra.mxu0 0
  %271 = vmatprep.subr.bf16.mxu0 0
  %272 = vmatpush1.bf16.xpose.msra.mxu0 0
  %273 = vmatprep.subr.bf16.mxu0 0
  %274 = vmatpush1.bf16.xpose.msra.mxu0 0
  %275 = vmatprep.subr.bf16.mxu0 0
  %276 = vmatpush1.bf16.xpose.msra.mxu0 0
  %277 = vmatprep.mubr.bf16.mxu0 0
  %278 = vmatmul.mubr.bf16.gmra.mrb[0].mxu0 %v179
  %v279 = vpop.f32.mrb[0].mxu0
  %v280 = vadd.f32 %v39, %v279
  %v281 = vpop.f32.mrb[0].mxu0
  %v282 = vpop.f32.mrb[0].mxu0
  %v283 = vadd.f32 %v40, %v282
  %v284 = vpop.f32.mrb[0].mxu0
  %285 = vmatprep.mubr.bf16.mxu0 0
  %286 = vmatmul.mubr.bf16.gmra.mrb[0].mxu0 %v180
  %v287 = vpop.f32.mrb[0].mxu0
  %v288 = vadd.f32 %v41, %v287
  %v289 = vpop.f32.mrb[0].mxu0
  %v290 = vpop.f32.mrb[0].mxu0
  %v291 = vadd.f32 %v42, %v290
  %v292 = vpop.f32.mrb[0].mxu0
  %293 = vdwg.mxu0
  %294 = vmax.xlane.f32.xlu0 %v280
  %v295 = vpop.xlane.xlu0 %294
  %296 = vmax.xlane.f32.xlu0 %v283
  %v297 = vpop.xlane.xlu0 %296
  %298 = vmax.xlane.f32.xlu0 %v288
  %v299 = vpop.xlane.xlu0 %298
  %300 = vmax.xlane.f32.xlu0 %v291
  %v301 = vpop.xlane.xlu0 %300
  %v302 = vsub.f32 %v280, %v295
  %v303 = vsub.f32 %v283, %v297
  %v304 = vsub.f32 %v288, %v299
  %v305 = vsub.f32 %v291, %v301
  %v306 = vmul.f32 %v302, 1.442695
  %v307 = vpow.pop %v306
  %v308 = vmul.f32 %v303, 1.442695
  %v309 = vpow.pop %v308
  %v310 = vmul.f32 %v304, 1.442695
  %v311 = vpow.pop %v310
  %v312 = vmul.f32 %v305, 1.442695
  %v313 = vpow.pop %v312
  %314 = vadd.xlane.f32.xlu0 %v307
  %v315 = vpop.xlane.xlu0 %314
  %316 = vadd.xlane.f32.xlu0 %v309
  %v317 = vpop.xlane.xlu0 %316
  %318 = vadd.xlane.f32.xlu0 %v311
  %v319 = vpop.xlane.xlu0 %318
  %320 = vadd.xlane.f32.xlu0 %v313
  %v321 = vpop.xlane.xlu0 %320
  %v322 = vrcp.pop %v315
  %v323 = vrcp.pop %v317
  %v324 = vrcp.pop %v319
  %v325 = vrcp.pop %v321
  %v326 = vmul.f32 %v307, %v322
  %v327 = vmul.f32 %v309, %v323
  %v328 = vmul.f32 %v311, %v324
  %v329 = vmul.f32 %v313, %v325
  %v330 = vpack.c.bf16 %v327, %v326
  %v331 = vpack.c.bf16 %v329, %v328
  %v332 = vld [vmem:[%s5] sm:$0xf]
  %v333 = vld [vmem:[%s5 + $0x4] sm:$0xf]
  %v334 = vld [vmem:[%s5 + $0x8] sm:$0xf]
  %v335 = vld [vmem:[%s5 + $0xc] sm:$0xf]
  %v336 = vld [vmem:[%s5 + $0x10] sm:$0xf]
  %v337 = vld [vmem:[%s5 + $0x14] sm:$0xf]
  %v338 = vld [vmem:[%s5 + $0x18] sm:$0xf]
  %v339 = vld [vmem:[%s5 + $0x1c] sm:$0xf]
  %v340 = vld [vmem:[%s5 + $0x20] sm:$0xf]
  %v341 = vld [vmem:[%s5 + $0x24] sm:$0xf]
  %v342 = vld [vmem:[%s5 + $0x28] sm:$0xf]
  %v343 = vld [vmem:[%s5 + $0x2c] sm:$0xf]
  %v344 = vld [vmem:[%s5 + $0x30] sm:$0xf]
  %v345 = vld [vmem:[%s5 + $0x34] sm:$0xf]
  %v346 = vld [vmem:[%s5 + $0x38] sm:$0xf]
  %v347 = vld [vmem:[%s5 + $0x3c] sm:$0xf]
  %v364 = vunpack.c.l.b16 %v332
  %v365 = vunpack.c.l.b16 %v333
  %v366 = vunpack.c.l.b16 %v334
  %v367 = vunpack.c.l.b16 %v335
  %v368 = vunpack.c.l.b16 %v336
  %v369 = vunpack.c.l.b16 %v337
  %v370 = vunpack.c.l.b16 %v338
  %v371 = vunpack.c.l.b16 %v339
  %v372 = vunpack.c.l.b16 %v340
  %v373 = vunpack.c.l.b16 %v341
  %v374 = vunpack.c.l.b16 %v342
  %v375 = vunpack.c.l.b16 %v343
  %v376 = vunpack.c.l.b16 %v344
  %v377 = vunpack.c.l.b16 %v345
  %v378 = vunpack.c.l.b16 %v346
  %v379 = vunpack.c.l.b16 %v347
  %v380 = vpack.c.b16 %v365, %v364
  %v381 = vpack.c.b16 %v367, %v366
  %v382 = vpack.c.b16 %v369, %v368
  %v383 = vpack.c.b16 %v371, %v370
  %v384 = vpack.c.b16 %v373, %v372
  %v385 = vpack.c.b16 %v375, %v374
  %v386 = vpack.c.b16 %v377, %v376
  %v387 = vpack.c.b16 %v379, %v378
  %396 = vmatprep.subr.bf16.mxu0 0
  %397 = vmatpush1.bf16.msra.mxu0 %v380
  %398 = vmatprep.subr.bf16.mxu0 0
  %399 = vmatpush1.bf16.msra.mxu0 %v381
  %400 = vmatprep.subr.bf16.mxu0 0
  %401 = vmatpush1.bf16.msra.mxu0 %v382
  %402 = vmatprep.subr.bf16.mxu0 0
  %403 = vmatpush1.bf16.msra.mxu0 %v383
  %404 = vmatprep.subr.bf16.mxu0 0
  %405 = vmatpush1.bf16.msra.mxu0 %v384
  %406 = vmatprep.subr.bf16.mxu0 0
  %407 = vmatpush1.bf16.msra.mxu0 %v385
  %408 = vmatprep.subr.bf16.mxu0 0
  %409 = vmatpush1.bf16.msra.mxu0 %v386
  %410 = vmatprep.subr.bf16.mxu0 0
  %411 = vmatpush1.bf16.msra.mxu0 %v387
  %412 = vmatprep.subr.bf16.mxu0 0
  %413 = vmatpush1.bf16.msra.mxu0 0
  %414 = vmatprep.subr.bf16.mxu0 0
  %415 = vmatpush1.bf16.msra.mxu0 0
  %416 = vmatprep.subr.bf16.mxu0 0
  %417 = vmatpush1.bf16.msra.mxu0 0
  %418 = vmatprep.subr.bf16.mxu0 0
  %419 = vmatpush1.bf16.msra.mxu0 0
  %420 = vmatprep.subr.bf16.mxu0 0
  %421 = vmatpush1.bf16.msra.mxu0 0
  %422 = vmatprep.subr.bf16.mxu0 0
  %423 = vmatpush1.bf16.msra.mxu0 0
  %424 = vmatprep.subr.bf16.mxu0 0
  %425 = vmatpush1.bf16.msra.mxu0 0
  %426 = vmatprep.subr.bf16.mxu0 0
  %427 = vmatpush1.bf16.msra.mxu0 0
  %428 = vmatprep.mubr.bf16.mxu0 0
  %429 = vmatmul.mubr.bf16.gmra.mrb[0].mxu0 %v330
  %v430 = vpop.f32.mrb[0].mxu0
  %v431 = vadd.f32 0.0, %v430
  %v432 = vpop.f32.mrb[0].mxu0
  %v433 = vpop.f32.mrb[0].mxu0
  %v434 = vadd.f32 0.0, %v433
  %v435 = vpop.f32.mrb[0].mxu0
  %436 = vmatprep.mubr.bf16.mxu0 0
  %437 = vmatmul.mubr.bf16.gmra.mrb[0].mxu0 %v331
  %v438 = vpop.f32.mrb[0].mxu0
  %v439 = vadd.f32 0.0, %v438
  %v440 = vpop.f32.mrb[0].mxu0
  %v441 = vpop.f32.mrb[0].mxu0
  %v442 = vadd.f32 0.0, %v441
  %v443 = vpop.f32.mrb[0].mxu0
  %444 = vdwg.mxu0
  %445 = vst [vmem:[%s6] sm:$0xff] %v431
  %446 = vst [vmem:[%s6 + $0x20] sm:$0xff] %v434
  %447 = vst [vmem:[%s6 + $0x40] sm:$0xff] %v439
  %448 = vst [vmem:[%s6 + $0x60] sm:$0xff] %v442
  %v449 = vadd.f32 %v326, 0.0
  %v450 = vadd.f32 %v327, 0.0
  %v451 = vadd.f32 %v328, 0.0
  %v452 = vadd.f32 %v329, 0.0
  %s453 = scalar_lea.vmem %s2, 64
  %v454 = vld [vmem:[%s453] sm:$0xf]
  %v455 = vld [vmem:[%s453 + $0x4] sm:$0xf]
  %v456 = vld [vmem:[%s453 + $0x8] sm:$0xf]
  %v457 = vld [vmem:[%s453 + $0xc] sm:$0xf]
  %v458 = vld [vmem:[%s453 + $0x10] sm:$0xf]
  %v459 = vld [vmem:[%s453 + $0x14] sm:$0xf]
  %v460 = vld [vmem:[%s453 + $0x18] sm:$0xf]
  %v461 = vld [vmem:[%s453 + $0x1c] sm:$0xf]
  %v462 = vld [vmem:[%s453 + $0x20] sm:$0xf]
  %v463 = vld [vmem:[%s453 + $0x24] sm:$0xf]
  %v464 = vld [vmem:[%s453 + $0x28] sm:$0xf]
  %v465 = vld [vmem:[%s453 + $0x2c] sm:$0xf]
  %v466 = vld [vmem:[%s453 + $0x30] sm:$0xf]
  %v467 = vld [vmem:[%s453 + $0x34] sm:$0xf]
  %v468 = vld [vmem:[%s453 + $0x38] sm:$0xf]
  %v469 = vld [vmem:[%s453 + $0x3c] sm:$0xf]
  %s470 = scalar_lea.vmem %s3, 1
  %v471 = vld [vmem:[%s470] sm:$0x1]
  %v473 = vlaneseq
  %v474 = vshrl.u32 %v473, 7
  %v475 = vsub.s32 0, %v474
  %v476 = vrot.slane %v471, %v475
  %v494 = vunpack.c.l.b16 %v454
  %v495 = vunpack.c.l.b16 %v455
  %v496 = vunpack.c.l.b16 %v456
  %v497 = vunpack.c.l.b16 %v457
  %v498 = vunpack.c.l.b16 %v458
  %v499 = vunpack.c.l.b16 %v459
  %v500 = vunpack.c.l.b16 %v460
  %v501 = vunpack.c.l.b16 %v461
  %v502 = vunpack.c.l.b16 %v462
  %v503 = vunpack.c.l.b16 %v463
  %v504 = vunpack.c.l.b16 %v464
  %v505 = vunpack.c.l.b16 %v465
  %v506 = vunpack.c.l.b16 %v466
  %v507 = vunpack.c.l.b16 %v467
  %v508 = vunpack.c.l.b16 %v468
  %v509 = vunpack.c.l.b16 %v469
  %v510 = vpack.c.b16 %v495, %v494
  %v511 = vpack.c.b16 %v497, %v496
  %v512 = vpack.c.b16 %v499, %v498
  %v513 = vpack.c.b16 %v501, %v500
  %v514 = vpack.c.b16 %v503, %v502
  %v515 = vpack.c.b16 %v505, %v504
  %v516 = vpack.c.b16 %v507, %v506
  %v517 = vpack.c.b16 %v509, %v508
  %526 = vmatprep.subr.bf16.mxu0 0
  %527 = vmatpush1.bf16.msra.mxu0 %v510
  %528 = vmatprep.subr.bf16.mxu0 0
  %529 = vmatpush1.bf16.msra.mxu0 %v511
  %530 = vmatprep.subr.bf16.mxu0 0
  %531 = vmatpush1.bf16.msra.mxu0 %v512
  %532 = vmatprep.subr.bf16.mxu0 0
  %533 = vmatpush1.bf16.msra.mxu0 %v513
  %534 = vmatprep.subr.bf16.mxu0 0
  %535 = vmatpush1.bf16.msra.mxu0 %v514
  %536 = vmatprep.subr.bf16.mxu0 0
  %537 = vmatpush1.bf16.msra.mxu0 %v515
  %538 = vmatprep.subr.bf16.mxu0 0
  %539 = vmatpush1.bf16.msra.mxu0 %v516
  %540 = vmatprep.subr.bf16.mxu0 0
  %541 = vmatpush1.bf16.msra.mxu0 %v517
  %542 = vmatprep.subr.bf16.mxu0 0
  %543 = vmatpush1.bf16.msra.mxu0 0
  %544 = vmatprep.subr.bf16.mxu0 0
  %545 = vmatpush1.bf16.msra.mxu0 0
  %546 = vmatprep.subr.bf16.mxu0 0
  %547 = vmatpush1.bf16.msra.mxu0 0
  %548 = vmatprep.subr.bf16.mxu0 0
  %549 = vmatpush1.bf16.msra.mxu0 0
  %550 = vmatprep.subr.bf16.mxu0 0
  %551 = vmatpush1.bf16.msra.mxu0 0
  %552 = vmatprep.subr.bf16.mxu0 0
  %553 = vmatpush1.bf16.msra.mxu0 0
  %554 = vmatprep.subr.bf16.mxu0 0
  %555 = vmatpush1.bf16.msra.mxu0 0
  %556 = vmatprep.subr.bf16.mxu0 0
  %557 = vmatpush1.bf16.msra.mxu0 0
  %558 = vmatprep.mubr.bf16.mxu0 0
  %559 = vmatmul.mubr.bf16.gmra.mrb[0].mxu0 %v74
  %v560 = vpop.f32.mrb[0].mxu0
  %v561 = vadd.f32 %v476, %v560
  %v562 = vpop.f32.mrb[0].mxu0
  %v563 = vpop.f32.mrb[0].mxu0
  %v564 = vadd.f32 %v476, %v563
  %v565 = vpop.f32.mrb[0].mxu0
  %566 = vmatprep.mubr.bf16.mxu0 0
  %567 = vmatmul.mubr.bf16.gmra.mrb[0].mxu0 %v75
  %v568 = vpop.f32.mrb[0].mxu0
  %v569 = vadd.f32 %v476, %v568
  %v570 = vpop.f32.mrb[0].mxu0
  %v571 = vpop.f32.mrb[0].mxu0
  %v572 = vadd.f32 %v476, %v571
  %v573 = vpop.f32.mrb[0].mxu0
  %574 = vdwg.mxu0
  %v575 = vmul.f32 %v561, 0.25
  %v576 = vmul.f32 %v564, 0.25
  %v577 = vmul.f32 %v569, 0.25
  %v578 = vmul.f32 %v572, 0.25
  %v579 = vpack.c.bf16 %v576, %v575
  %v580 = vpack.c.bf16 %v578, %v577
  %s581 = scalar_lea.vmem %s4, 64
  %v582 = vld [vmem:[%s581] sm:$0xf]
  %v583 = vld [vmem:[%s581 + $0x4] sm:$0xf]
  %v584 = vld [vmem:[%s581 + $0x8] sm:$0xf]
  %v585 = vld [vmem:[%s581 + $0xc] sm:$0xf]
  %v586 = vld [vmem:[%s581 + $0x10] sm:$0xf]
  %v587 = vld [vmem:[%s581 + $0x14] sm:$0xf]
  %v588 = vld [vmem:[%s581 + $0x18] sm:$0xf]
  %v589 = vld [vmem:[%s581 + $0x1c] sm:$0xf]
  %v590 = vld [vmem:[%s581 + $0x20] sm:$0xf]
  %v591 = vld [vmem:[%s581 + $0x24] sm:$0xf]
  %v592 = vld [vmem:[%s581 + $0x28] sm:$0xf]
  %v593 = vld [vmem:[%s581 + $0x2c] sm:$0xf]
  %v594 = vld [vmem:[%s581 + $0x30] sm:$0xf]
  %v595 = vld [vmem:[%s581 + $0x34] sm:$0xf]
  %v596 = vld [vmem:[%s581 + $0x38] sm:$0xf]
  %v597 = vld [vmem:[%s581 + $0x3c] sm:$0xf]
  %v614 = vunpack.c.l.b16 %v582
  %v615 = vunpack.c.l.b16 %v583
  %v616 = vunpack.c.l.b16 %v584
  %v617 = vunpack.c.l.b16 %v585
  %v618 = vunpack.c.l.b16 %v586
  %v619 = vunpack.c.l.b16 %v587
  %v620 = vunpack.c.l.b16 %v588
  %v621 = vunpack.c.l.b16 %v589
  %v622 = vunpack.c.l.b16 %v590
  %v623 = vunpack.c.l.b16 %v591
  %v624 = vunpack.c.l.b16 %v592
  %v625 = vunpack.c.l.b16 %v593
  %v626 = vunpack.c.l.b16 %v594
  %v627 = vunpack.c.l.b16 %v595
  %v628 = vunpack.c.l.b16 %v596
  %v629 = vunpack.c.l.b16 %v597
  %v630 = vpack.c.b16 %v615, %v614
  %v631 = vpack.c.b16 %v617, %v616
  %v632 = vpack.c.b16 %v619, %v618
  %v633 = vpack.c.b16 %v621, %v620
  %v634 = vpack.c.b16 %v623, %v622
  %v635 = vpack.c.b16 %v625, %v624
  %v636 = vpack.c.b16 %v627, %v626
  %v637 = vpack.c.b16 %v629, %v628
  %646 = vmatprep.subr.bf16.mxu0 0
  %647 = vmatpush1.bf16.xpose.msra.mxu0 %v630
  %648 = vmatprep.subr.bf16.mxu0 0
  %649 = vmatpush1.bf16.xpose.msra.mxu0 %v631
  %650 = vmatprep.subr.bf16.mxu0 0
  %651 = vmatpush1.bf16.xpose.msra.mxu0 %v632
  %652 = vmatprep.subr.bf16.mxu0 0
  %653 = vmatpush1.bf16.xpose.msra.mxu0 %v633
  %654 = vmatprep.subr.bf16.mxu0 0
  %655 = vmatpush1.bf16.xpose.msra.mxu0 %v634
  %656 = vmatprep.subr.bf16.mxu0 0
  %657 = vmatpush1.bf16.xpose.msra.mxu0 %v635
  %658 = vmatprep.subr.bf16.mxu0 0
  %659 = vmatpush1.bf16.xpose.msra.mxu0 %v636
  %660 = vmatprep.subr.bf16.mxu0 0
  %661 = vmatpush1.bf16.xpose.msra.mxu0 %v637
  %662 = vmatprep.subr.bf16.mxu0 0
  %663 = vmatpush1.bf16.xpose.msra.mxu0 0
  %664 = vmatprep.subr.bf16.mxu0 0
  %665 = vmatpush1.bf16.xpose.msra.mxu0 0
  %666 = vmatprep.subr.bf16.mxu0 0
  %667 = vmatpush1.bf16.xpose.msra.mxu0 0
  %668 = vmatprep.subr.bf16.mxu0 0
  %669 = vmatpush1.bf16.xpose.msra.mxu0 0
  %670 = vmatprep.subr.bf16.mxu0 0
  %671 = vmatpush1.bf16.xpose.msra.mxu0 0
  %672 = vmatprep.subr.bf16.mxu0 0
  %673 = vmatpush1.bf16.xpose.msra.mxu0 0
  %674 = vmatprep.subr.bf16.mxu0 0
  %675 = vmatpush1.bf16.xpose.msra.mxu0 0
  %676 = vmatprep.subr.bf16.mxu0 0
  %677 = vmatpush1.bf16.xpose.msra.mxu0 0
  %678 = vmatprep.mubr.bf16.mxu0 0
  %679 = vmatmul.mubr.bf16.gmra.mrb[0].mxu0 %v579
  %v680 = vpop.f32.mrb[0].mxu0
  %v681 = vadd.f32 %v39, %v680
  %v682 = vpop.f32.mrb[0].mxu0
  %v683 = vpop.f32.mrb[0].mxu0
  %v684 = vadd.f32 %v40, %v683
  %v685 = vpop.f32.mrb[0].mxu0
  %686 = vmatprep.mubr.bf16.mxu0 0
  %687 = vmatmul.mubr.bf16.gmra.mrb[0].mxu0 %v580
  %v688 = vpop.f32.mrb[0].mxu0
  %v689 = vadd.f32 %v41, %v688
  %v690 = vpop.f32.mrb[0].mxu0
  %v691 = vpop.f32.mrb[0].mxu0
  %v692 = vadd.f32 %v42, %v691
  %v693 = vpop.f32.mrb[0].mxu0
  %694 = vdwg.mxu0
  %695 = vmax.xlane.f32.xlu0 %v681
  %v696 = vpop.xlane.xlu0 %695
  %697 = vmax.xlane.f32.xlu0 %v684
  %v698 = vpop.xlane.xlu0 %697
  %699 = vmax.xlane.f32.xlu0 %v689
  %v700 = vpop.xlane.xlu0 %699
  %701 = vmax.xlane.f32.xlu0 %v692
  %v702 = vpop.xlane.xlu0 %701
  %v703 = vsub.f32 %v681, %v696
  %v704 = vsub.f32 %v684, %v698
  %v705 = vsub.f32 %v689, %v700
  %v706 = vsub.f32 %v692, %v702
  %v707 = vmul.f32 %v703, 1.442695
  %v708 = vpow.pop %v707
  %v709 = vmul.f32 %v704, 1.442695
  %v710 = vpow.pop %v709
  %v711 = vmul.f32 %v705, 1.442695
  %v712 = vpow.pop %v711
  %v713 = vmul.f32 %v706, 1.442695
  %v714 = vpow.pop %v713
  %715 = vadd.xlane.f32.xlu0 %v708
  %v716 = vpop.xlane.xlu0 %715
  %717 = vadd.xlane.f32.xlu0 %v710
  %v718 = vpop.xlane.xlu0 %717
  %719 = vadd.xlane.f32.xlu0 %v712
  %v720 = vpop.xlane.xlu0 %719
  %721 = vadd.xlane.f32.xlu0 %v714
  %v722 = vpop.xlane.xlu0 %721
  %v723 = vrcp.pop %v716
  %v724 = vrcp.pop %v718
  %v725 = vrcp.pop %v720
  %v726 = vrcp.pop %v722
  %v727 = vmul.f32 %v708, %v723
  %v728 = vmul.f32 %v710, %v724
  %v729 = vmul.f32 %v712, %v725
  %v730 = vmul.f32 %v714, %v726
  %v731 = vpack.c.bf16 %v728, %v727
  %v732 = vpack.c.bf16 %v730, %v729
  %s733 = scalar_lea.vmem %s5, 64
  %v734 = vld [vmem:[%s733] sm:$0xf]
  %v735 = vld [vmem:[%s733 + $0x4] sm:$0xf]
  %v736 = vld [vmem:[%s733 + $0x8] sm:$0xf]
  %v737 = vld [vmem:[%s733 + $0xc] sm:$0xf]
  %v738 = vld [vmem:[%s733 + $0x10] sm:$0xf]
  %v739 = vld [vmem:[%s733 + $0x14] sm:$0xf]
  %v740 = vld [vmem:[%s733 + $0x18] sm:$0xf]
  %v741 = vld [vmem:[%s733 + $0x1c] sm:$0xf]
  %v742 = vld [vmem:[%s733 + $0x20] sm:$0xf]
  %v743 = vld [vmem:[%s733 + $0x24] sm:$0xf]
  %v744 = vld [vmem:[%s733 + $0x28] sm:$0xf]
  %v745 = vld [vmem:[%s733 + $0x2c] sm:$0xf]
  %v746 = vld [vmem:[%s733 + $0x30] sm:$0xf]
  %v747 = vld [vmem:[%s733 + $0x34] sm:$0xf]
  %v748 = vld [vmem:[%s733 + $0x38] sm:$0xf]
  %v749 = vld [vmem:[%s733 + $0x3c] sm:$0xf]
  %v766 = vunpack.c.l.b16 %v734
  %v767 = vunpack.c.l.b16 %v735
  %v768 = vunpack.c.l.b16 %v736
  %v769 = vunpack.c.l.b16 %v737
  %v770 = vunpack.c.l.b16 %v738
  %v771 = vunpack.c.l.b16 %v739
  %v772 = vunpack.c.l.b16 %v740
  %v773 = vunpack.c.l.b16 %v741
  %v774 = vunpack.c.l.b16 %v742
  %v775 = vunpack.c.l.b16 %v743
  %v776 = vunpack.c.l.b16 %v744
  %v777 = vunpack.c.l.b16 %v745
  %v778 = vunpack.c.l.b16 %v746
  %v779 = vunpack.c.l.b16 %v747
  %v780 = vunpack.c.l.b16 %v748
  %v781 = vunpack.c.l.b16 %v749
  %v782 = vpack.c.b16 %v767, %v766
  %v783 = vpack.c.b16 %v769, %v768
  %v784 = vpack.c.b16 %v771, %v770
  %v785 = vpack.c.b16 %v773, %v772
  %v786 = vpack.c.b16 %v775, %v774
  %v787 = vpack.c.b16 %v777, %v776
  %v788 = vpack.c.b16 %v779, %v778
  %v789 = vpack.c.b16 %v781, %v780
  %798 = vmatprep.subr.bf16.mxu0 0
  %799 = vmatpush1.bf16.msra.mxu0 %v782
  %800 = vmatprep.subr.bf16.mxu0 0
  %801 = vmatpush1.bf16.msra.mxu0 %v783
  %802 = vmatprep.subr.bf16.mxu0 0
  %803 = vmatpush1.bf16.msra.mxu0 %v784
  %804 = vmatprep.subr.bf16.mxu0 0
  %805 = vmatpush1.bf16.msra.mxu0 %v785
  %806 = vmatprep.subr.bf16.mxu0 0
  %807 = vmatpush1.bf16.msra.mxu0 %v786
  %808 = vmatprep.subr.bf16.mxu0 0
  %809 = vmatpush1.bf16.msra.mxu0 %v787
  %810 = vmatprep.subr.bf16.mxu0 0
  %811 = vmatpush1.bf16.msra.mxu0 %v788
  %812 = vmatprep.subr.bf16.mxu0 0
  %813 = vmatpush1.bf16.msra.mxu0 %v789
  %814 = vmatprep.subr.bf16.mxu0 0
  %815 = vmatpush1.bf16.msra.mxu0 0
  %816 = vmatprep.subr.bf16.mxu0 0
  %817 = vmatpush1.bf16.msra.mxu0 0
  %818 = vmatprep.subr.bf16.mxu0 0
  %819 = vmatpush1.bf16.msra.mxu0 0
  %820 = vmatprep.subr.bf16.mxu0 0
  %821 = vmatpush1.bf16.msra.mxu0 0
  %822 = vmatprep.subr.bf16.mxu0 0
  %823 = vmatpush1.bf16.msra.mxu0 0
  %824 = vmatprep.subr.bf16.mxu0 0
  %825 = vmatpush1.bf16.msra.mxu0 0
  %826 = vmatprep.subr.bf16.mxu0 0
  %827 = vmatpush1.bf16.msra.mxu0 0
  %828 = vmatprep.subr.bf16.mxu0 0
  %829 = vmatpush1.bf16.msra.mxu0 0
  %830 = vmatprep.mubr.bf16.mxu0 0
  %831 = vmatmul.mubr.bf16.gmra.mrb[0].mxu0 %v731
  %v832 = vpop.f32.mrb[0].mxu0
  %v833 = vadd.f32 0.0, %v832
  %v834 = vpop.f32.mrb[0].mxu0
  %v835 = vpop.f32.mrb[0].mxu0
  %v836 = vadd.f32 0.0, %v835
  %v837 = vpop.f32.mrb[0].mxu0
  %838 = vmatprep.mubr.bf16.mxu0 0
  %839 = vmatmul.mubr.bf16.gmra.mrb[0].mxu0 %v732
  %v840 = vpop.f32.mrb[0].mxu0
  %v841 = vadd.f32 0.0, %v840
  %v842 = vpop.f32.mrb[0].mxu0
  %v843 = vpop.f32.mrb[0].mxu0
  %v844 = vadd.f32 0.0, %v843
  %v845 = vpop.f32.mrb[0].mxu0
  %846 = vdwg.mxu0
  %847 = vst [vmem:[%s6 + $0x8] sm:$0xff] %v833
  %848 = vst [vmem:[%s6 + $0x28] sm:$0xff] %v836
  %849 = vst [vmem:[%s6 + $0x48] sm:$0xff] %v841
  %850 = vst [vmem:[%s6 + $0x68] sm:$0xff] %v844
  %v851 = vadd.f32 %v449, %v727
  %v852 = vadd.f32 %v450, %v728
  %v853 = vadd.f32 %v451, %v729
  %v854 = vadd.f32 %v452, %v730
  %s855 = scalar_lea.vmem %s2, 128
  %v856 = vld [vmem:[%s855] sm:$0xf]
  %v857 = vld [vmem:[%s855 + $0x4] sm:$0xf]
  %v858 = vld [vmem:[%s855 + $0x8] sm:$0xf]
  %v859 = vld [vmem:[%s855 + $0xc] sm:$0xf]
  %v860 = vld [vmem:[%s855 + $0x10] sm:$0xf]
  %v861 = vld [vmem:[%s855 + $0x14] sm:$0xf]
  %v862 = vld [vmem:[%s855 + $0x18] sm:$0xf]
  %v863 = vld [vmem:[%s855 + $0x1c] sm:$0xf]
  %v864 = vld [vmem:[%s855 + $0x20] sm:$0xf]
  %v865 = vld [vmem:[%s855 + $0x24] sm:$0xf]
  %v866 = vld [vmem:[%s855 + $0x28] sm:$0xf]
  %v867 = vld [vmem:[%s855 + $0x2c] sm:$0xf]
  %v868 = vld [vmem:[%s855 + $0x30] sm:$0xf]
  %v869 = vld [vmem:[%s855 + $0x34] sm:$0xf]
  %v870 = vld [vmem:[%s855 + $0x38] sm:$0xf]
  %v871 = vld [vmem:[%s855 + $0x3c] sm:$0xf]
  %s872 = scalar_lea.vmem %s3, 2
  %v873 = vld [vmem:[%s872] sm:$0x1]
  %v875 = vlaneseq
  %v876 = vshrl.u32 %v875, 7
  %v877 = vsub.s32 0, %v876
  %v878 = vrot.slane %v873, %v877
  %v896 = vunpack.c.l.b16 %v856
  %v897 = vunpack.c.l.b16 %v857
  %v898 = vunpack.c.l.b16 %v858
  %v899 = vunpack.c.l.b16 %v859
  %v900 = vunpack.c.l.b16 %v860
  %v901 = vunpack.c.l.b16 %v861
  %v902 = vunpack.c.l.b16 %v862
  %v903 = vunpack.c.l.b16 %v863
  %v904 = vunpack.c.l.b16 %v864
  %v905 = vunpack.c.l.b16 %v865
  %v906 = vunpack.c.l.b16 %v866
  %v907 = vunpack.c.l.b16 %v867
  %v908 = vunpack.c.l.b16 %v868
  %v909 = vunpack.c.l.b16 %v869
  %v910 = vunpack.c.l.b16 %v870
  %v911 = vunpack.c.l.b16 %v871
  %v912 = vpack.c.b16 %v897, %v896
  %v913 = vpack.c.b16 %v899, %v898
  %v914 = vpack.c.b16 %v901, %v900
  %v915 = vpack.c.b16 %v903, %v902
  %v916 = vpack.c.b16 %v905, %v904
  %v917 = vpack.c.b16 %v907, %v906
  %v918 = vpack.c.b16 %v909, %v908
  %v919 = vpack.c.b16 %v911, %v910
  %928 = vmatprep.subr.bf16.mxu0 0
  %929 = vmatpush1.bf16.msra.mxu0 %v912
  %930 = vmatprep.subr.bf16.mxu0 0
  %931 = vmatpush1.bf16.msra.mxu0 %v913
  %932 = vmatprep.subr.bf16.mxu0 0
  %933 = vmatpush1.bf16.msra.mxu0 %v914
  %934 = vmatprep.subr.bf16.mxu0 0
  %935 = vmatpush1.bf16.msra.mxu0 %v915
  %936 = vmatprep.subr.bf16.mxu0 0
  %937 = vmatpush1.bf16.msra.mxu0 %v916
  %938 = vmatprep.subr.bf16.mxu0 0
  %939 = vmatpush1.bf16.msra.mxu0 %v917
  %940 = vmatprep.subr.bf16.mxu0 0
  %941 = vmatpush1.bf16.msra.mxu0 %v918
  %942 = vmatprep.subr.bf16.mxu0 0
  %943 = vmatpush1.bf16.msra.mxu0 %v919
  %944 = vmatprep.subr.bf16.mxu0 0
  %945 = vmatpush1.bf16.msra.mxu0 0
  %946 = vmatprep.subr.bf16.mxu0 0
  %947 = vmatpush1.bf16.msra.mxu0 0
  %948 = vmatprep.subr.bf16.mxu0 0
  %949 = vmatpush1.bf16.msra.mxu0 0
  %950 = vmatprep.subr.bf16.mxu0 0
  %951 = vmatpush1.bf16.msra.mxu0 0
  %952 = vmatprep.subr.bf16.mxu0 0
  %953 = vmatpush1.bf16.msra.mxu0 0
  %954 = vmatprep.subr.bf16.mxu0 0
  %955 = vmatpush1.bf16.msra.mxu0 0
  %956 = vmatprep.subr.bf16.mxu0 0
  %957 = vmatpush1.bf16.msra.mxu0 0
  %958 = vmatprep.subr.bf16.mxu0 0
  %959 = vmatpush1.bf16.msra.mxu0 0
  %960 = vmatprep.mubr.bf16.mxu0 0
  %961 = vmatmul.mubr.bf16.gmra.mrb[0].mxu0 %v74
  %v962 = vpop.f32.mrb[0].mxu0
  %v963 = vadd.f32 %v878, %v962
  %v964 = vpop.f32.mrb[0].mxu0
  %v965 = vpop.f32.mrb[0].mxu0
  %v966 = vadd.f32 %v878, %v965
  %v967 = vpop.f32.mrb[0].mxu0
  %968 = vmatprep.mubr.bf16.mxu0 0
  %969 = vmatmul.mubr.bf16.gmra.mrb[0].mxu0 %v75
  %v970 = vpop.f32.mrb[0].mxu0
  %v971 = vadd.f32 %v878, %v970
  %v972 = vpop.f32.mrb[0].mxu0
  %v973 = vpop.f32.mrb[0].mxu0
  %v974 = vadd.f32 %v878, %v973
  %v975 = vpop.f32.mrb[0].mxu0
  %976 = vdwg.mxu0
  %v977 = vmul.f32 %v963, 0.25
  %v978 = vmul.f32 %v966, 0.25
  %v979 = vmul.f32 %v971, 0.25
  %v980 = vmul.f32 %v974, 0.25
  %v981 = vpack.c.bf16 %v978, %v977
  %v982 = vpack.c.bf16 %v980, %v979
  %s983 = scalar_lea.vmem %s4, 128
  %v984 = vld [vmem:[%s983] sm:$0xf]
  %v985 = vld [vmem:[%s983 + $0x4] sm:$0xf]
  %v986 = vld [vmem:[%s983 + $0x8] sm:$0xf]
  %v987 = vld [vmem:[%s983 + $0xc] sm:$0xf]
  %v988 = vld [vmem:[%s983 + $0x10] sm:$0xf]
  %v989 = vld [vmem:[%s983 + $0x14] sm:$0xf]
  %v990 = vld [vmem:[%s983 + $0x18] sm:$0xf]
  %v991 = vld [vmem:[%s983 + $0x1c] sm:$0xf]
  %v992 = vld [vmem:[%s983 + $0x20] sm:$0xf]
  %v993 = vld [vmem:[%s983 + $0x24] sm:$0xf]
  %v994 = vld [vmem:[%s983 + $0x28] sm:$0xf]
  %v995 = vld [vmem:[%s983 + $0x2c] sm:$0xf]
  %v996 = vld [vmem:[%s983 + $0x30] sm:$0xf]
  %v997 = vld [vmem:[%s983 + $0x34] sm:$0xf]
  %v998 = vld [vmem:[%s983 + $0x38] sm:$0xf]
  %v999 = vld [vmem:[%s983 + $0x3c] sm:$0xf]
  %v1016 = vunpack.c.l.b16 %v984
  %v1017 = vunpack.c.l.b16 %v985
  %v1018 = vunpack.c.l.b16 %v986
  %v1019 = vunpack.c.l.b16 %v987
  %v1020 = vunpack.c.l.b16 %v988
  %v1021 = vunpack.c.l.b16 %v989
  %v1022 = vunpack.c.l.b16 %v990
  %v1023 = vunpack.c.l.b16 %v991
  %v1024 = vunpack.c.l.b16 %v992
  %v1025 = vunpack.c.l.b16 %v993
  %v1026 = vunpack.c.l.b16 %v994
  %v1027 = vunpack.c.l.b16 %v995
  %v1028 = vunpack.c.l.b16 %v996
  %v1029 = vunpack.c.l.b16 %v997
  %v1030 = vunpack.c.l.b16 %v998
  %v1031 = vunpack.c.l.b16 %v999
  %v1032 = vpack.c.b16 %v1017, %v1016
  %v1033 = vpack.c.b16 %v1019, %v1018
  %v1034 = vpack.c.b16 %v1021, %v1020
  %v1035 = vpack.c.b16 %v1023, %v1022
  %v1036 = vpack.c.b16 %v1025, %v1024
  %v1037 = vpack.c.b16 %v1027, %v1026
  %v1038 = vpack.c.b16 %v1029, %v1028
  %v1039 = vpack.c.b16 %v1031, %v1030
  %1048 = vmatprep.subr.bf16.mxu0 0
  %1049 = vmatpush1.bf16.xpose.msra.mxu0 %v1032
  %1050 = vmatprep.subr.bf16.mxu0 0
  %1051 = vmatpush1.bf16.xpose.msra.mxu0 %v1033
  %1052 = vmatprep.subr.bf16.mxu0 0
  %1053 = vmatpush1.bf16.xpose.msra.mxu0 %v1034
  %1054 = vmatprep.subr.bf16.mxu0 0
  %1055 = vmatpush1.bf16.xpose.msra.mxu0 %v1035
  %1056 = vmatprep.subr.bf16.mxu0 0
  %1057 = vmatpush1.bf16.xpose.msra.mxu0 %v1036
  %1058 = vmatprep.subr.bf16.mxu0 0
  %1059 = vmatpush1.bf16.xpose.msra.mxu0 %v1037
  %1060 = vmatprep.subr.bf16.mxu0 0
  %1061 = vmatpush1.bf16.xpose.msra.mxu0 %v1038
  %1062 = vmatprep.subr.bf16.mxu0 0
  %1063 = vmatpush1.bf16.xpose.msra.mxu0 %v1039
  %1064 = vmatprep.subr.bf16.mxu0 0
  %1065 = vmatpush1.bf16.xpose.msra.mxu0 0
  %1066 = vmatprep.subr.bf16.mxu0 0
  %1067 = vmatpush1.bf16.xpose.msra.mxu0 0
  %1068 = vmatprep.subr.bf16.mxu0 0
  %1069 = vmatpush1.bf16.xpose.msra.mxu0 0
  %1070 = vmatprep.subr.bf16.mxu0 0
  %1071 = vmatpush1.bf16.xpose.msra.mxu0 0
  %1072 = vmatprep.subr.bf16.mxu0 0
  %1073 = vmatpush1.bf16.xpose.msra.mxu0 0
  %1074 = vmatprep.subr.bf16.mxu0 0
  %1075 = vmatpush1.bf16.xpose.msra.mxu0 0
  %1076 = vmatprep.subr.bf16.mxu0 0
  %1077 = vmatpush1.bf16.xpose.msra.mxu0 0
  %1078 = vmatprep.subr.bf16.mxu0 0
  %1079 = vmatpush1.bf16.xpose.msra.mxu0 0
  %1080 = vmatprep.mubr.bf16.mxu0 0
  %1081 = vmatmul.mubr.bf16.gmra.mrb[0].mxu0 %v981
  %v1082 = vpop.f32.mrb[0].mxu0
  %v1083 = vadd.f32 %v39, %v1082
  %v1084 = vpop.f32.mrb[0].mxu0
  %v1085 = vpop.f32.mrb[0].mxu0
  %v1086 = vadd.f32 %v40, %v1085
  %v1087 = vpop.f32.mrb[0].mxu0
  %1088 = vmatprep.mubr.bf16.mxu0 0
  %1089 = vmatmul.mubr.bf16.gmra.mrb[0].mxu0 %v982
  %v1090 = vpop.f32.mrb[0].mxu0
  %v1091 = vadd.f32 %v41, %v1090
  %v1092 = vpop.f32.mrb[0].mxu0
  %v1093 = vpop.f32.mrb[0].mxu0
  %v1094 = vadd.f32 %v42, %v1093
  %v1095 = vpop.f32.mrb[0].mxu0
  %1096 = vdwg.mxu0
  %1097 = vmax.xlane.f32.xlu0 %v1083
  %v1098 = vpop.xlane.xlu0 %1097
  %1099 = vmax.xlane.f32.xlu0 %v1086
  %v1100 = vpop.xlane.xlu0 %1099
  %1101 = vmax.xlane.f32.xlu0 %v1091
  %v1102 = vpop.xlane.xlu0 %1101
  %1103 = vmax.xlane.f32.xlu0 %v1094
  %v1104 = vpop.xlane.xlu0 %1103
  %v1105 = vsub.f32 %v1083, %v1098
  %v1106 = vsub.f32 %v1086, %v1100
  %v1107 = vsub.f32 %v1091, %v1102
  %v1108 = vsub.f32 %v1094, %v1104
  %v1109 = vmul.f32 %v1105, 1.442695
  %v1110 = vpow.pop %v1109
  %v1111 = vmul.f32 %v1106, 1.442695
  %v1112 = vpow.pop %v1111
  %v1113 = vmul.f32 %v1107, 1.442695
  %v1114 = vpow.pop %v1113
  %v1115 = vmul.f32 %v1108, 1.442695
  %v1116 = vpow.pop %v1115
  %1117 = vadd.xlane.f32.xlu0 %v1110
  %v1118 = vpop.xlane.xlu0 %1117
  %1119 = vadd.xlane.f32.xlu0 %v1112
  %v1120 = vpop.xlane.xlu0 %1119
  %1121 = vadd.xlane.f32.xlu0 %v1114
  %v1122 = vpop.xlane.xlu0 %1121
  %1123 = vadd.xlane.f32.xlu0 %v1116
  %v1124 = vpop.xlane.xlu0 %1123
  %v1125 = vrcp.pop %v1118
  %v1126 = vrcp.pop %v1120
  %v1127 = vrcp.pop %v1122
  %v1128 = vrcp.pop %v1124
  %v1129 = vmul.f32 %v1110, %v1125
  %v1130 = vmul.f32 %v1112, %v1126
  %v1131 = vmul.f32 %v1114, %v1127
  %v1132 = vmul.f32 %v1116, %v1128
  %v1133 = vpack.c.bf16 %v1130, %v1129
  %v1134 = vpack.c.bf16 %v1132, %v1131
  %s1135 = scalar_lea.vmem %s5, 128
  %v1136 = vld [vmem:[%s1135] sm:$0xf]
  %v1137 = vld [vmem:[%s1135 + $0x4] sm:$0xf]
  %v1138 = vld [vmem:[%s1135 + $0x8] sm:$0xf]
  %v1139 = vld [vmem:[%s1135 + $0xc] sm:$0xf]
  %v1140 = vld [vmem:[%s1135 + $0x10] sm:$0xf]
  %v1141 = vld [vmem:[%s1135 + $0x14] sm:$0xf]
  %v1142 = vld [vmem:[%s1135 + $0x18] sm:$0xf]
  %v1143 = vld [vmem:[%s1135 + $0x1c] sm:$0xf]
  %v1144 = vld [vmem:[%s1135 + $0x20] sm:$0xf]
  %v1145 = vld [vmem:[%s1135 + $0x24] sm:$0xf]
  %v1146 = vld [vmem:[%s1135 + $0x28] sm:$0xf]
  %v1147 = vld [vmem:[%s1135 + $0x2c] sm:$0xf]
  %v1148 = vld [vmem:[%s1135 + $0x30] sm:$0xf]
  %v1149 = vld [vmem:[%s1135 + $0x34] sm:$0xf]
  %v1150 = vld [vmem:[%s1135 + $0x38] sm:$0xf]
  %v1151 = vld [vmem:[%s1135 + $0x3c] sm:$0xf]
  %v1168 = vunpack.c.l.b16 %v1136
  %v1169 = vunpack.c.l.b16 %v1137
  %v1170 = vunpack.c.l.b16 %v1138
  %v1171 = vunpack.c.l.b16 %v1139
  %v1172 = vunpack.c.l.b16 %v1140
  %v1173 = vunpack.c.l.b16 %v1141
  %v1174 = vunpack.c.l.b16 %v1142
  %v1175 = vunpack.c.l.b16 %v1143
  %v1176 = vunpack.c.l.b16 %v1144
  %v1177 = vunpack.c.l.b16 %v1145
  %v1178 = vunpack.c.l.b16 %v1146
  %v1179 = vunpack.c.l.b16 %v1147
  %v1180 = vunpack.c.l.b16 %v1148
  %v1181 = vunpack.c.l.b16 %v1149
  %v1182 = vunpack.c.l.b16 %v1150
  %v1183 = vunpack.c.l.b16 %v1151
  %v1184 = vpack.c.b16 %v1169, %v1168
  %v1185 = vpack.c.b16 %v1171, %v1170
  %v1186 = vpack.c.b16 %v1173, %v1172
  %v1187 = vpack.c.b16 %v1175, %v1174
  %v1188 = vpack.c.b16 %v1177, %v1176
  %v1189 = vpack.c.b16 %v1179, %v1178
  %v1190 = vpack.c.b16 %v1181, %v1180
  %v1191 = vpack.c.b16 %v1183, %v1182
  %1200 = vmatprep.subr.bf16.mxu0 0
  %1201 = vmatpush1.bf16.msra.mxu0 %v1184
  %1202 = vmatprep.subr.bf16.mxu0 0
  %1203 = vmatpush1.bf16.msra.mxu0 %v1185
  %1204 = vmatprep.subr.bf16.mxu0 0
  %1205 = vmatpush1.bf16.msra.mxu0 %v1186
  %1206 = vmatprep.subr.bf16.mxu0 0
  %1207 = vmatpush1.bf16.msra.mxu0 %v1187
  %1208 = vmatprep.subr.bf16.mxu0 0
  %1209 = vmatpush1.bf16.msra.mxu0 %v1188
  %1210 = vmatprep.subr.bf16.mxu0 0
  %1211 = vmatpush1.bf16.msra.mxu0 %v1189
  %1212 = vmatprep.subr.bf16.mxu0 0
  %1213 = vmatpush1.bf16.msra.mxu0 %v1190
  %1214 = vmatprep.subr.bf16.mxu0 0
  %1215 = vmatpush1.bf16.msra.mxu0 %v1191
  %1216 = vmatprep.subr.bf16.mxu0 0
  %1217 = vmatpush1.bf16.msra.mxu0 0
  %1218 = vmatprep.subr.bf16.mxu0 0
  %1219 = vmatpush1.bf16.msra.mxu0 0
  %1220 = vmatprep.subr.bf16.mxu0 0
  %1221 = vmatpush1.bf16.msra.mxu0 0
  %1222 = vmatprep.subr.bf16.mxu0 0
  %1223 = vmatpush1.bf16.msra.mxu0 0
  %1224 = vmatprep.subr.bf16.mxu0 0
  %1225 = vmatpush1.bf16.msra.mxu0 0
  %1226 = vmatprep.subr.bf16.mxu0 0
  %1227 = vmatpush1.bf16.msra.mxu0 0
  %1228 = vmatprep.subr.bf16.mxu0 0
  %1229 = vmatpush1.bf16.msra.mxu0 0
  %1230 = vmatprep.subr.bf16.mxu0 0
  %1231 = vmatpush1.bf16.msra.mxu0 0
  %1232 = vmatprep.mubr.bf16.mxu0 0
  %1233 = vmatmul.mubr.bf16.gmra.mrb[0].mxu0 %v1133
  %v1234 = vpop.f32.mrb[0].mxu0
  %v1235 = vadd.f32 0.0, %v1234
  %v1236 = vpop.f32.mrb[0].mxu0
  %v1237 = vpop.f32.mrb[0].mxu0
  %v1238 = vadd.f32 0.0, %v1237
  %v1239 = vpop.f32.mrb[0].mxu0
  %1240 = vmatprep.mubr.bf16.mxu0 0
  %1241 = vmatmul.mubr.bf16.gmra.mrb[0].mxu0 %v1134
  %v1242 = vpop.f32.mrb[0].mxu0
  %v1243 = vadd.f32 0.0, %v1242
  %v1244 = vpop.f32.mrb[0].mxu0
  %v1245 = vpop.f32.mrb[0].mxu0
  %v1246 = vadd.f32 0.0, %v1245
  %v1247 = vpop.f32.mrb[0].mxu0
  %1248 = vdwg.mxu0
  %1249 = vst [vmem:[%s6 + $0x10] sm:$0xff] %v1235
  %1250 = vst [vmem:[%s6 + $0x30] sm:$0xff] %v1238
  %1251 = vst [vmem:[%s6 + $0x50] sm:$0xff] %v1243
  %1252 = vst [vmem:[%s6 + $0x70] sm:$0xff] %v1246
  %v1253 = vadd.f32 %v851, %v1129
  %v1254 = vadd.f32 %v852, %v1130
  %v1255 = vadd.f32 %v853, %v1131
  %v1256 = vadd.f32 %v854, %v1132
  %s1257 = scalar_lea.vmem %s2, 192
  %v1258 = vld [vmem:[%s1257] sm:$0xf]
  %v1259 = vld [vmem:[%s1257 + $0x4] sm:$0xf]
  %v1260 = vld [vmem:[%s1257 + $0x8] sm:$0xf]
  %v1261 = vld [vmem:[%s1257 + $0xc] sm:$0xf]
  %v1262 = vld [vmem:[%s1257 + $0x10] sm:$0xf]
  %v1263 = vld [vmem:[%s1257 + $0x14] sm:$0xf]
  %v1264 = vld [vmem:[%s1257 + $0x18] sm:$0xf]
  %v1265 = vld [vmem:[%s1257 + $0x1c] sm:$0xf]
  %v1266 = vld [vmem:[%s1257 + $0x20] sm:$0xf]
  %v1267 = vld [vmem:[%s1257 + $0x24] sm:$0xf]
  %v1268 = vld [vmem:[%s1257 + $0x28] sm:$0xf]
  %v1269 = vld [vmem:[%s1257 + $0x2c] sm:$0xf]
  %v1270 = vld [vmem:[%s1257 + $0x30] sm:$0xf]
  %v1271 = vld [vmem:[%s1257 + $0x34] sm:$0xf]
  %v1272 = vld [vmem:[%s1257 + $0x38] sm:$0xf]
  %v1273 = vld [vmem:[%s1257 + $0x3c] sm:$0xf]
  %s1274 = scalar_lea.vmem %s3, 3
  %v1275 = vld [vmem:[%s1274] sm:$0x1]
  %v1277 = vlaneseq
  %v1278 = vshrl.u32 %v1277, 7
  %v1279 = vsub.s32 0, %v1278
  %v1280 = vrot.slane %v1275, %v1279
  %v1298 = vunpack.c.l.b16 %v1258
  %v1299 = vunpack.c.l.b16 %v1259
  %v1300 = vunpack.c.l.b16 %v1260
  %v1301 = vunpack.c.l.b16 %v1261
  %v1302 = vunpack.c.l.b16 %v1262
  %v1303 = vunpack.c.l.b16 %v1263
  %v1304 = vunpack.c.l.b16 %v1264
  %v1305 = vunpack.c.l.b16 %v1265
  %v1306 = vunpack.c.l.b16 %v1266
  %v1307 = vunpack.c.l.b16 %v1267
  %v1308 = vunpack.c.l.b16 %v1268
  %v1309 = vunpack.c.l.b16 %v1269
  %v1310 = vunpack.c.l.b16 %v1270
  %v1311 = vunpack.c.l.b16 %v1271
  %v1312 = vunpack.c.l.b16 %v1272
  %v1313 = vunpack.c.l.b16 %v1273
  %v1314 = vpack.c.b16 %v1299, %v1298
  %v1315 = vpack.c.b16 %v1301, %v1300
  %v1316 = vpack.c.b16 %v1303, %v1302
  %v1317 = vpack.c.b16 %v1305, %v1304
  %v1318 = vpack.c.b16 %v1307, %v1306
  %v1319 = vpack.c.b16 %v1309, %v1308
  %v1320 = vpack.c.b16 %v1311, %v1310
  %v1321 = vpack.c.b16 %v1313, %v1312
  %1330 = vmatprep.subr.bf16.mxu0 0
  %1331 = vmatpush1.bf16.msra.mxu0 %v1314
  %1332 = vmatprep.subr.bf16.mxu0 0
  %1333 = vmatpush1.bf16.msra.mxu0 %v1315
  %1334 = vmatprep.subr.bf16.mxu0 0
  %1335 = vmatpush1.bf16.msra.mxu0 %v1316
  %1336 = vmatprep.subr.bf16.mxu0 0
  %1337 = vmatpush1.bf16.msra.mxu0 %v1317
  %1338 = vmatprep.subr.bf16.mxu0 0
  %1339 = vmatpush1.bf16.msra.mxu0 %v1318
  %1340 = vmatprep.subr.bf16.mxu0 0
  %1341 = vmatpush1.bf16.msra.mxu0 %v1319
  %1342 = vmatprep.subr.bf16.mxu0 0
  %1343 = vmatpush1.bf16.msra.mxu0 %v1320
  %1344 = vmatprep.subr.bf16.mxu0 0
  %1345 = vmatpush1.bf16.msra.mxu0 %v1321
  %1346 = vmatprep.subr.bf16.mxu0 0
  %1347 = vmatpush1.bf16.msra.mxu0 0
  %1348 = vmatprep.subr.bf16.mxu0 0
  %1349 = vmatpush1.bf16.msra.mxu0 0
  %1350 = vmatprep.subr.bf16.mxu0 0
  %1351 = vmatpush1.bf16.msra.mxu0 0
  %1352 = vmatprep.subr.bf16.mxu0 0
  %1353 = vmatpush1.bf16.msra.mxu0 0
  %1354 = vmatprep.subr.bf16.mxu0 0
  %1355 = vmatpush1.bf16.msra.mxu0 0
  %1356 = vmatprep.subr.bf16.mxu0 0
  %1357 = vmatpush1.bf16.msra.mxu0 0
  %1358 = vmatprep.subr.bf16.mxu0 0
  %1359 = vmatpush1.bf16.msra.mxu0 0
  %1360 = vmatprep.subr.bf16.mxu0 0
  %1361 = vmatpush1.bf16.msra.mxu0 0
  %1362 = vmatprep.mubr.bf16.mxu0 0
  %1363 = vmatmul.mubr.bf16.gmra.mrb[0].mxu0 %v74
  %v1364 = vpop.f32.mrb[0].mxu0
  %v1365 = vadd.f32 %v1280, %v1364
  %v1366 = vpop.f32.mrb[0].mxu0
  %v1367 = vpop.f32.mrb[0].mxu0
  %v1368 = vadd.f32 %v1280, %v1367
  %v1369 = vpop.f32.mrb[0].mxu0
  %1370 = vmatprep.mubr.bf16.mxu0 0
  %1371 = vmatmul.mubr.bf16.gmra.mrb[0].mxu0 %v75
  %v1372 = vpop.f32.mrb[0].mxu0
  %v1373 = vadd.f32 %v1280, %v1372
  %v1374 = vpop.f32.mrb[0].mxu0
  %v1375 = vpop.f32.mrb[0].mxu0
  %v1376 = vadd.f32 %v1280, %v1375
  %v1377 = vpop.f32.mrb[0].mxu0
  %1378 = vdwg.mxu0
  %v1379 = vmul.f32 %v1365, 0.25
  %v1380 = vmul.f32 %v1368, 0.25
  %v1381 = vmul.f32 %v1373, 0.25
  %v1382 = vmul.f32 %v1376, 0.25
  %v1383 = vpack.c.bf16 %v1380, %v1379
  %v1384 = vpack.c.bf16 %v1382, %v1381
  %s1385 = scalar_lea.vmem %s4, 192
  %v1386 = vld [vmem:[%s1385] sm:$0xf]
  %v1387 = vld [vmem:[%s1385 + $0x4] sm:$0xf]
  %v1388 = vld [vmem:[%s1385 + $0x8] sm:$0xf]
  %v1389 = vld [vmem:[%s1385 + $0xc] sm:$0xf]
  %v1390 = vld [vmem:[%s1385 + $0x10] sm:$0xf]
  %v1391 = vld [vmem:[%s1385 + $0x14] sm:$0xf]
  %v1392 = vld [vmem:[%s1385 + $0x18] sm:$0xf]
  %v1393 = vld [vmem:[%s1385 + $0x1c] sm:$0xf]
  %v1394 = vld [vmem:[%s1385 + $0x20] sm:$0xf]
  %v1395 = vld [vmem:[%s1385 + $0x24] sm:$0xf]
  %v1396 = vld [vmem:[%s1385 + $0x28] sm:$0xf]
  %v1397 = vld [vmem:[%s1385 + $0x2c] sm:$0xf]
  %v1398 = vld [vmem:[%s1385 + $0x30] sm:$0xf]
  %v1399 = vld [vmem:[%s1385 + $0x34] sm:$0xf]
  %v1400 = vld [vmem:[%s1385 + $0x38] sm:$0xf]
  %v1401 = vld [vmem:[%s1385 + $0x3c] sm:$0xf]
  %v1418 = vunpack.c.l.b16 %v1386
  %v1419 = vunpack.c.l.b16 %v1387
  %v1420 = vunpack.c.l.b16 %v1388
  %v1421 = vunpack.c.l.b16 %v1389
  %v1422 = vunpack.c.l.b16 %v1390
  %v1423 = vunpack.c.l.b16 %v1391
  %v1424 = vunpack.c.l.b16 %v1392
  %v1425 = vunpack.c.l.b16 %v1393
  %v1426 = vunpack.c.l.b16 %v1394
  %v1427 = vunpack.c.l.b16 %v1395
  %v1428 = vunpack.c.l.b16 %v1396
  %v1429 = vunpack.c.l.b16 %v1397
  %v1430 = vunpack.c.l.b16 %v1398
  %v1431 = vunpack.c.l.b16 %v1399
  %v1432 = vunpack.c.l.b16 %v1400
  %v1433 = vunpack.c.l.b16 %v1401
  %v1434 = vpack.c.b16 %v1419, %v1418
  %v1435 = vpack.c.b16 %v1421, %v1420
  %v1436 = vpack.c.b16 %v1423, %v1422
  %v1437 = vpack.c.b16 %v1425, %v1424
  %v1438 = vpack.c.b16 %v1427, %v1426
  %v1439 = vpack.c.b16 %v1429, %v1428
  %v1440 = vpack.c.b16 %v1431, %v1430
  %v1441 = vpack.c.b16 %v1433, %v1432
  %1450 = vmatprep.subr.bf16.mxu0 0
  %1451 = vmatpush1.bf16.xpose.msra.mxu0 %v1434
  %1452 = vmatprep.subr.bf16.mxu0 0
  %1453 = vmatpush1.bf16.xpose.msra.mxu0 %v1435
  %1454 = vmatprep.subr.bf16.mxu0 0
  %1455 = vmatpush1.bf16.xpose.msra.mxu0 %v1436
  %1456 = vmatprep.subr.bf16.mxu0 0
  %1457 = vmatpush1.bf16.xpose.msra.mxu0 %v1437
  %1458 = vmatprep.subr.bf16.mxu0 0
  %1459 = vmatpush1.bf16.xpose.msra.mxu0 %v1438
  %1460 = vmatprep.subr.bf16.mxu0 0
  %1461 = vmatpush1.bf16.xpose.msra.mxu0 %v1439
  %1462 = vmatprep.subr.bf16.mxu0 0
  %1463 = vmatpush1.bf16.xpose.msra.mxu0 %v1440
  %1464 = vmatprep.subr.bf16.mxu0 0
  %1465 = vmatpush1.bf16.xpose.msra.mxu0 %v1441
  %1466 = vmatprep.subr.bf16.mxu0 0
  %1467 = vmatpush1.bf16.xpose.msra.mxu0 0
  %1468 = vmatprep.subr.bf16.mxu0 0
  %1469 = vmatpush1.bf16.xpose.msra.mxu0 0
  %1470 = vmatprep.subr.bf16.mxu0 0
  %1471 = vmatpush1.bf16.xpose.msra.mxu0 0
  %1472 = vmatprep.subr.bf16.mxu0 0
  %1473 = vmatpush1.bf16.xpose.msra.mxu0 0
  %1474 = vmatprep.subr.bf16.mxu0 0
  %1475 = vmatpush1.bf16.xpose.msra.mxu0 0
  %1476 = vmatprep.subr.bf16.mxu0 0
  %1477 = vmatpush1.bf16.xpose.msra.mxu0 0
  %1478 = vmatprep.subr.bf16.mxu0 0
  %1479 = vmatpush1.bf16.xpose.msra.mxu0 0
  %1480 = vmatprep.subr.bf16.mxu0 0
  %1481 = vmatpush1.bf16.xpose.msra.mxu0 0
  %1482 = vmatprep.mubr.bf16.mxu0 0
  %1483 = vmatmul.mubr.bf16.gmra.mrb[0].mxu0 %v1383
  %v1484 = vpop.f32.mrb[0].mxu0
  %v1485 = vadd.f32 %v39, %v1484
  %v1486 = vpop.f32.mrb[0].mxu0
  %v1487 = vpop.f32.mrb[0].mxu0
  %v1488 = vadd.f32 %v40, %v1487
  %v1489 = vpop.f32.mrb[0].mxu0
  %1490 = vmatprep.mubr.bf16.mxu0 0
  %1491 = vmatmul.mubr.bf16.gmra.mrb[0].mxu0 %v1384
  %v1492 = vpop.f32.mrb[0].mxu0
  %v1493 = vadd.f32 %v41, %v1492
  %v1494 = vpop.f32.mrb[0].mxu0
  %v1495 = vpop.f32.mrb[0].mxu0
  %v1496 = vadd.f32 %v42, %v1495
  %v1497 = vpop.f32.mrb[0].mxu0
  %1498 = vdwg.mxu0
  %1499 = vmax.xlane.f32.xlu0 %v1485
  %v1500 = vpop.xlane.xlu0 %1499
  %1501 = vmax.xlane.f32.xlu0 %v1488
  %v1502 = vpop.xlane.xlu0 %1501
  %1503 = vmax.xlane.f32.xlu0 %v1493
  %v1504 = vpop.xlane.xlu0 %1503
  %1505 = vmax.xlane.f32.xlu0 %v1496
  %v1506 = vpop.xlane.xlu0 %1505
  %v1507 = vsub.f32 %v1485, %v1500
  %v1508 = vsub.f32 %v1488, %v1502
  %v1509 = vsub.f32 %v1493, %v1504
  %v1510 = vsub.f32 %v1496, %v1506
  %v1511 = vmul.f32 %v1507, 1.442695
  %v1512 = vpow.pop %v1511
  %v1513 = vmul.f32 %v1508, 1.442695
  %v1514 = vpow.pop %v1513
  %v1515 = vmul.f32 %v1509, 1.442695
  %v1516 = vpow.pop %v1515
  %v1517 = vmul.f32 %v1510, 1.442695
  %v1518 = vpow.pop %v1517
  %1519 = vadd.xlane.f32.xlu0 %v1512
  %v1520 = vpop.xlane.xlu0 %1519
  %1521 = vadd.xlane.f32.xlu0 %v1514
  %v1522 = vpop.xlane.xlu0 %1521
  %1523 = vadd.xlane.f32.xlu0 %v1516
  %v1524 = vpop.xlane.xlu0 %1523
  %1525 = vadd.xlane.f32.xlu0 %v1518
  %v1526 = vpop.xlane.xlu0 %1525
  %v1527 = vrcp.pop %v1520
  %v1528 = vrcp.pop %v1522
  %v1529 = vrcp.pop %v1524
  %v1530 = vrcp.pop %v1526
  %v1531 = vmul.f32 %v1512, %v1527
  %v1532 = vmul.f32 %v1514, %v1528
  %v1533 = vmul.f32 %v1516, %v1529
  %v1534 = vmul.f32 %v1518, %v1530
  %v1535 = vpack.c.bf16 %v1532, %v1531
  %v1536 = vpack.c.bf16 %v1534, %v1533
  %s1537 = scalar_lea.vmem %s5, 192
  %v1538 = vld [vmem:[%s1537] sm:$0xf]
  %v1539 = vld [vmem:[%s1537 + $0x4] sm:$0xf]
  %v1540 = vld [vmem:[%s1537 + $0x8] sm:$0xf]
  %v1541 = vld [vmem:[%s1537 + $0xc] sm:$0xf]
  %v1542 = vld [vmem:[%s1537 + $0x10] sm:$0xf]
  %v1543 = vld [vmem:[%s1537 + $0x14] sm:$0xf]
  %v1544 = vld [vmem:[%s1537 + $0x18] sm:$0xf]
  %v1545 = vld [vmem:[%s1537 + $0x1c] sm:$0xf]
  %v1546 = vld [vmem:[%s1537 + $0x20] sm:$0xf]
  %v1547 = vld [vmem:[%s1537 + $0x24] sm:$0xf]
  %v1548 = vld [vmem:[%s1537 + $0x28] sm:$0xf]
  %v1549 = vld [vmem:[%s1537 + $0x2c] sm:$0xf]
  %v1550 = vld [vmem:[%s1537 + $0x30] sm:$0xf]
  %v1551 = vld [vmem:[%s1537 + $0x34] sm:$0xf]
  %v1552 = vld [vmem:[%s1537 + $0x38] sm:$0xf]
  %v1553 = vld [vmem:[%s1537 + $0x3c] sm:$0xf]
  %v1570 = vunpack.c.l.b16 %v1538
  %v1571 = vunpack.c.l.b16 %v1539
  %v1572 = vunpack.c.l.b16 %v1540
  %v1573 = vunpack.c.l.b16 %v1541
  %v1574 = vunpack.c.l.b16 %v1542
  %v1575 = vunpack.c.l.b16 %v1543
  %v1576 = vunpack.c.l.b16 %v1544
  %v1577 = vunpack.c.l.b16 %v1545
  %v1578 = vunpack.c.l.b16 %v1546
  %v1579 = vunpack.c.l.b16 %v1547
  %v1580 = vunpack.c.l.b16 %v1548
  %v1581 = vunpack.c.l.b16 %v1549
  %v1582 = vunpack.c.l.b16 %v1550
  %v1583 = vunpack.c.l.b16 %v1551
  %v1584 = vunpack.c.l.b16 %v1552
  %v1585 = vunpack.c.l.b16 %v1553
  %v1586 = vpack.c.b16 %v1571, %v1570
  %v1587 = vpack.c.b16 %v1573, %v1572
  %v1588 = vpack.c.b16 %v1575, %v1574
  %v1589 = vpack.c.b16 %v1577, %v1576
  %v1590 = vpack.c.b16 %v1579, %v1578
  %v1591 = vpack.c.b16 %v1581, %v1580
  %v1592 = vpack.c.b16 %v1583, %v1582
  %v1593 = vpack.c.b16 %v1585, %v1584
  %1602 = vmatprep.subr.bf16.mxu0 0
  %1603 = vmatpush1.bf16.msra.mxu0 %v1586
  %1604 = vmatprep.subr.bf16.mxu0 0
  %1605 = vmatpush1.bf16.msra.mxu0 %v1587
  %1606 = vmatprep.subr.bf16.mxu0 0
  %1607 = vmatpush1.bf16.msra.mxu0 %v1588
  %1608 = vmatprep.subr.bf16.mxu0 0
  %1609 = vmatpush1.bf16.msra.mxu0 %v1589
  %1610 = vmatprep.subr.bf16.mxu0 0
  %1611 = vmatpush1.bf16.msra.mxu0 %v1590
  %1612 = vmatprep.subr.bf16.mxu0 0
  %1613 = vmatpush1.bf16.msra.mxu0 %v1591
  %1614 = vmatprep.subr.bf16.mxu0 0
  %1615 = vmatpush1.bf16.msra.mxu0 %v1592
  %1616 = vmatprep.subr.bf16.mxu0 0
  %1617 = vmatpush1.bf16.msra.mxu0 %v1593
  %1618 = vmatprep.subr.bf16.mxu0 0
  %1619 = vmatpush1.bf16.msra.mxu0 0
  %1620 = vmatprep.subr.bf16.mxu0 0
  %1621 = vmatpush1.bf16.msra.mxu0 0
  %1622 = vmatprep.subr.bf16.mxu0 0
  %1623 = vmatpush1.bf16.msra.mxu0 0
  %1624 = vmatprep.subr.bf16.mxu0 0
  %1625 = vmatpush1.bf16.msra.mxu0 0
  %1626 = vmatprep.subr.bf16.mxu0 0
  %1627 = vmatpush1.bf16.msra.mxu0 0
  %1628 = vmatprep.subr.bf16.mxu0 0
  %1629 = vmatpush1.bf16.msra.mxu0 0
  %1630 = vmatprep.subr.bf16.mxu0 0
  %1631 = vmatpush1.bf16.msra.mxu0 0
  %1632 = vmatprep.subr.bf16.mxu0 0
  %1633 = vmatpush1.bf16.msra.mxu0 0
  %1634 = vmatprep.mubr.bf16.mxu0 0
  %1635 = vmatmul.mubr.bf16.gmra.mrb[0].mxu0 %v1535
  %v1636 = vpop.f32.mrb[0].mxu0
  %v1637 = vadd.f32 0.0, %v1636
  %v1638 = vpop.f32.mrb[0].mxu0
  %v1639 = vpop.f32.mrb[0].mxu0
  %v1640 = vadd.f32 0.0, %v1639
  %v1641 = vpop.f32.mrb[0].mxu0
  %1642 = vmatprep.mubr.bf16.mxu0 0
  %1643 = vmatmul.mubr.bf16.gmra.mrb[0].mxu0 %v1536
  %v1644 = vpop.f32.mrb[0].mxu0
  %v1645 = vadd.f32 0.0, %v1644
  %v1646 = vpop.f32.mrb[0].mxu0
  %v1647 = vpop.f32.mrb[0].mxu0
  %v1648 = vadd.f32 0.0, %v1647
  %v1649 = vpop.f32.mrb[0].mxu0
  %1650 = vdwg.mxu0
  %1651 = vst [vmem:[%s6 + $0x18] sm:$0xff] %v1637
  %1652 = vst [vmem:[%s6 + $0x38] sm:$0xff] %v1640
  %1653 = vst [vmem:[%s6 + $0x58] sm:$0xff] %v1645
  %1654 = vst [vmem:[%s6 + $0x78] sm:$0xff] %v1648
  %v1655 = vadd.f32 %v1253, %v1531
  %v1656 = vadd.f32 %v1254, %v1532
  %v1657 = vadd.f32 %v1255, %v1533
  %v1658 = vadd.f32 %v1256, %v1534
  %v1659 = vmul.f32 %v1655, 0.25
  %v1660 = vmul.f32 %v1656, 0.25
  %v1661 = vmul.f32 %v1657, 0.25
  %v1662 = vmul.f32 %v1658, 0.25
  %1663 = vst [vmem:[%s7] sm:$0xff] %v1659
  %1664 = vst [vmem:[%s7 + $0x8] sm:$0xff] %v1660
  %1665 = vst [vmem:[%s7 + $0x10] sm:$0xff] %v1661
  %1666 = vst [vmem:[%s7 + $0x18] sm:$0xff] %v1662
  // Predicated region
  $region26: #{nonlocal_interaction_forward.1} parent=0 // pred_check
    _
  $region27: #{nonlocal_interaction_forward.1} parent=0 // pred_check_branch
    %1668 = sbr.rel (0) target = $region29
  $region28: #{nonlocal_interaction_forward.1} parent=0 // pred_region
    _
  $region29: #{nonlocal_interaction_forward.1} parent=0 // pred_fallthru
    _
  // Predicated region
  $region30: #{nonlocal_interaction_forward.1} parent=0 // pred_check
    _
  $region31: #{nonlocal_interaction_forward.1} parent=0 // pred_check_branch
    %1670 = sbr.rel (0) target = $region33
  $region32: #{nonlocal_interaction_forward.1} parent=0 // pred_region
    _
  $region33: #{nonlocal_interaction_forward.1} parent=0 // pred_fallthru
    _
  // Predicated region
  $region34: #{nonlocal_interaction_forward.1} parent=0 // pred_check
    _
  $region35: #{nonlocal_interaction_forward.1} parent=0 // pred_check_branch
    %1672 = sbr.rel (0) target = $region37
  $region36: #{nonlocal_interaction_forward.1} parent=0 // pred_region
    _
  $region37: #{nonlocal_interaction_forward.1} parent=0 // pred_fallthru
    _
  // Predicated region
  $region38: #{nonlocal_interaction_forward.1} parent=0 // pred_check
    _
  $region39: #{nonlocal_interaction_forward.1} parent=0 // pred_check_branch
    %1674 = sbr.rel (0) target = $region41
  $region40: #{nonlocal_interaction_forward.1} parent=0 // pred_region
    _
  $region41: #{nonlocal_interaction_forward.1} parent=0 // pred_fallthru
    _

</llo_original>
